<compile_context>
chip_gen: v7x
topology: tpu7x:2x2x1
jax: 0.10.0
libtpu: 0.0.40
codegen_flags: <defaults>
</compile_context>

<pallas_src>
import functools

import numpy as np
import jax
import jax.numpy as jnp
from jax.experimental import pallas as pl
from jax.experimental.pallas import tpu as pltpu

# Module dims (constructor args chosen small; 512 is the hardcoded hidden width of
# mlp_pre_pool; bottleneck chosen lane-dense = 128).
EMBEDDING_DIM = 16
H_DIM = 32
BOTTLENECK_DIM = 128
MID_DIM = 512
BN_EPS = 1e-5

_BIG = 1e9            # sentinel: padded rows -> relu(pair) == 0 exactly
_MAX_PAIR_ROWS = 2048  # cap on (tile_i * P_pad) so the 512-wide slab fits v7x VMEM


def _choose_tile(p_pad, max_rows=_MAX_PAIR_ROWS):
    """Largest i-tile (multiple of 8 that divides p_pad) with tile*p_pad <= max_rows."""
    if p_pad * p_pad <= max_rows:
        return p_pad
    t = max(8, (max_rows // p_pad) // 8 * 8)
    while t > 8 and p_pad % t != 0:
        t -= 8
    return t


def pool_kernel(counts_ref,                      # scalar prefetch (SMEM): (num_seqs,) int32
                pos_ref, h_ref,                  # (P_pad, 2), (P_pad, H_DIM) f32
                wfold_ref, w1h_ref, g1_ref, beta1_ref,
                w2_ref, g2_ref, beta2_ref,       # w2 is bf16
                out_ref,                         # (P_pad, BOTTLENECK_DIM) f32
                z2_ref, bprime_ref, ssum_ref, ssq_ref,
                *, tile_i):
    p_pad = out_ref.shape[0]
    n_tiles = p_pad // tile_i
    chunk = tile_i * p_pad

    n_ped = jnp.maximum(counts_ref[pl.program_id(0)], 1)     # guard empty sequence
    inv_n = 1.0 / n_ped.astype(jnp.float32)
    inv_n2 = inv_n * inv_n

    pos = pos_ref[...]                                        # (P_pad, 2)
    hid = h_ref[...]                                          # (P_pad, H_DIM)
    wfold = wfold_ref[...]                                    # (2, MID)

    # ---- per-pedestrian projections (P rows, never P^2) -----------------------
    # Spatial embedding is folded into layer 1 (wfold = wse @ w1e); the K=2 matmul
    # is done on the VPU (two broadcast FMAs) instead of a padded MXU pass.
    pproj = pos[:, 0:1] * wfold[0:1, :] + pos[:, 1:2] * wfold[1:2, :]          # (P, MID)
    hproj = jnp.dot(hid, w1h_ref[...], preferred_element_type=jnp.float32)     # (P, MID)
    a = pproj + hproj          # contribution of neighbour j (biases dropped: cancel in BN)
    b = pproj                  # contribution of query i

    # ---- analytic layer-1 BatchNorm statistics --------------------------------
    # z1[i,j] = a[j] - b[i]  =>  pair mean = mean_j a - mean_i b,
    #                            pair var  = var_j a + var_i b (cross term vanishes).
    ridx = jax.lax.broadcasted_iota(jnp.int32, (p_pad, 1), 0)
    valid = ridx < n_ped                                      # (P_pad, 1) bool
    rmask = valid.astype(jnp.float32)
    am = jnp.sum(a * rmask, axis=0, keepdims=True) * inv_n
    bm = jnp.sum(b * rmask, axis=0, keepdims=True) * inv_n
    da = (a - am) * rmask
    db = (b - bm) * rmask
    v1 = (jnp.sum(da * da, axis=0, keepdims=True)
          + jnp.sum(db * db, axis=0, keepdims=True)) * inv_n
    s1 = jax.lax.rsqrt(v1 + BN_EPS) * g1_ref[...]             # (1, MID)

    # Fold the BN1 affine into the P-row vectors: bn1(z1)[i,j] = a'[j] - b'[i].
    # Padded rows get -/+BIG so every padded (i, j) pair yields relu(...) == 0.
    a_p = jnp.where(valid, (a - am) * s1 + beta1_ref[...], -_BIG)
    b_p = jnp.where(valid, (b - bm) * s1, _BIG)
    bprime_ref[...] = b_p

    w2 = w2_ref[...]                                          # (MID, B) bf16
    ssum_ref[...] = jnp.zeros_like(ssum_ref)
    ssq_ref[...] = jnp.zeros_like(ssq_ref)

    # ---- i-tiled pair expansion + 512->128 matmul (bf16 operands, f32 acc) -----
    def tile_body(t, carry):
        i0 = pl.multiple_of(t * tile_i, tile_i)
        row0 = pl.multiple_of(t * chunk, chunk)
        b_t = bprime_ref[pl.ds(i0, tile_i), :]                           # (tile_i, MID)
        z1_t = jnp.maximum(a_p[None, :, :] - b_t[:, None, :], 0.0)      # (tile_i, P, MID)
        z1_t = z1_t.reshape(chunk, MID_DIM).astype(jnp.bfloat16)
        z2_t = jnp.dot(z1_t, w2, preferred_element_type=jnp.float32)    # (chunk, B) f32
        ssum_ref[...] += jnp.sum(z2_t, axis=0, keepdims=True)
        ssq_ref[...] += jnp.sum(z2_t * z2_t, axis=0, keepdims=True)
        z2_ref[pl.ds(row0, chunk), :] = z2_t
        return carry

    jax.lax.fori_loop(0, n_tiles, tile_body, 0)

    # ---- layer-2 BatchNorm (padded pair rows are exactly zero, so the unmasked
    # sums equal the masked ones; divide by n_ped^2) + ReLU + max over neighbours.
    m2 = ssum_ref[...] * inv_n2
    v2 = ssq_ref[...] * inv_n2 - m2 * m2
    s2 = jax.lax.rsqrt(v2 + BN_EPS) * g2_ref[...]
    shift2 = beta2_ref[...] - m2 * s2

    zn = jnp.maximum(z2_ref[...] * s2 + shift2, 0.0)          # (P_pad^2, B)
    zn = zn.reshape(p_pad, p_pad, BOTTLENECK_DIM)
    # Zero padded neighbours j before the max: ReLU output >= 0 and every valid
    # query has at least one valid neighbour, so zeros never win incorrectly.
    zn = zn * rmask.reshape(1, p_pad, 1)
    out_ref[...] = jnp.max(zn, axis=1)                        # lane-dense (P_pad, 128)


def pool_hidden_net_forward(params, h_states, seq_start_end, end_pos):
    """h_states: (num_layers, batch, h_dim); end_pos: (batch, 2);
    seq_start_end: static list of (start, end) Python ints."""
    h_flat = h_states.reshape(-1, H_DIM)
    num_seqs = len(seq_start_end)
    peds = [int(e) - int(s) for (s, e) in seq_start_end]
    assert min(peds) >= 1, "empty sequences are not supported"
    p_pad = max(8, -(-max(peds) // 8) * 8)                    # sublane-aligned bucket
    tile_i = _choose_tile(p_pad)

    # One gather to build padded/stacked per-sequence inputs (padding rows re-read
    # row `start`; the kernel only needs them finite — it masks them explicitly).
    gidx = np.zeros((num_seqs, p_pad), np.int32)
    for k, (s, e) in enumerate(seq_start_end):
        s, e = int(s), int(e)
        gidx[k, : e - s] = np.arange(s, e, dtype=np.int32)
        gidx[k, e - s:] = s
    gidx = jnp.asarray(gidx)
    pos_b = jnp.take(end_pos, gidx, axis=0)                   # (num_seqs, P_pad, 2)
    h_b = jnp.take(h_flat, gidx, axis=0)                      # (num_seqs, P_pad, H)
    counts = jnp.asarray(peds, jnp.int32)

    # Fold spatial_embedding (Linear(2, emb), no activation) into layer 1 — exact.
    # Biases feeding a BatchNorm cancel exactly, so bse/b1/b2 are not passed at all.
    wfold = params["wse"] @ params["w1e"]                     # (2, MID)
    w2_bf16 = params["w2"].astype(jnp.bfloat16)

    # Rough live-footprint estimate: z2 scratch + epilogue temps + bf16/f32 slab.
    vmem_est = (p_pad * p_pad * BOTTLENECK_DIM * 4 * 3
                + tile_i * p_pad * MID_DIM * (2 + 4) + (2 << 20))
    vmem_limit = None
    if vmem_est > (14 << 20):
        # v5e default scoped limit is 16 MiB (v6e/v7x: 32 MiB); raise it for large
        # crowds but stay below v7x's 64 MiB physical VMEM.
        vmem_limit = int(min(56 << 20, max(32 << 20, vmem_est)))

    kern = functools.partial(pool_kernel, tile_i=tile_i)
    out = pl.pallas_call(
        kern,
        out_shape=jax.ShapeDtypeStruct((num_seqs, p_pad, BOTTLENECK_DIM), jnp.float32),
        grid_spec=pltpu.PrefetchScalarGridSpec(
            num_scalar_prefetch=1,
            grid=(num_seqs,),
            in_specs=[
                # per-sequence inputs: new block per grid step (double-buffered)
                pl.BlockSpec((None, p_pad, 2), lambda s, c: (s, 0, 0)),
                pl.BlockSpec((None, p_pad, H_DIM), lambda s, c: (s, 0, 0)),
                # weights / BN params: constant block index -> stay VMEM-resident
                pl.BlockSpec((2, MID_DIM), lambda s, c: (0, 0)),
                pl.BlockSpec((H_DIM, MID_DIM), lambda s, c: (0, 0)),
                pl.BlockSpec((1, MID_DIM), lambda s, c: (0, 0)),
                pl.BlockSpec((1, MID_DIM), lambda s, c: (0, 0)),
                pl.BlockSpec((MID_DIM, BOTTLENECK_DIM), lambda s, c: (0, 0)),
                pl.BlockSpec((1, BOTTLENECK_DIM), lambda s, c: (0, 0)),
                pl.BlockSpec((1, BOTTLENECK_DIM), lambda s, c: (0, 0)),
            ],
            out_specs=pl.BlockSpec((None, p_pad, BOTTLENECK_DIM),
                                   lambda s, c: (s, 0, 0)),
            scratch_shapes=[
                pltpu.VMEM((p_pad * p_pad, BOTTLENECK_DIM), jnp.float32),  # raw z2
                pltpu.VMEM((p_pad, MID_DIM), jnp.float32),                 # b'
                pltpu.VMEM((1, BOTTLENECK_DIM), jnp.float32),              # sum(z2)
                pltpu.VMEM((1, BOTTLENECK_DIM), jnp.float32),              # sum(z2^2)
            ],
        ),
        compiler_params=pltpu.CompilerParams(
            dimension_semantics=("parallel",),       # shards sequences across TCs on v7x
            vmem_limit_bytes=vmem_limit),
    )(counts, pos_b, h_b, wfold, params["w1h"], params["g1"], params["beta1"],
      w2_bf16, params["g2"], params["beta2"])

    # One gather to strip padding and restore the per-sequence concatenation order.
    out_idx = np.concatenate(
        [k * p_pad + np.arange(p, dtype=np.int32) for k, p in enumerate(peds)])
    return out.reshape(num_seqs * p_pad, BOTTLENECK_DIM)[jnp.asarray(out_idx)]


def init_params(key):
    ks = jax.random.split(key, 10)
    w1 = 0.05 * jax.random.normal(ks[2], (EMBEDDING_DIM + H_DIM, MID_DIM), jnp.float32)
    return dict(
        wse=0.1 * jax.random.normal(ks[0], (2, EMBEDDING_DIM), jnp.float32),
        bse=0.1 * jax.random.normal(ks[1], (1, EMBEDDING_DIM), jnp.float32),
        w1e=w1[:EMBEDDING_DIM],                 # split of Linear(emb+h, 512) weight^T
        w1h=w1[EMBEDDING_DIM:],
        b1=0.05 * jax.random.normal(ks[3], (1, MID_DIM), jnp.float32),
        g1=1.0 + 0.05 * jax.random.normal(ks[4], (1, MID_DIM), jnp.float32),
        beta1=0.05 * jax.random.normal(ks[5], (1, MID_DIM), jnp.float32),
        w2=0.05 * jax.random.normal(ks[6], (MID_DIM, BOTTLENECK_DIM), jnp.float32),
        b2=0.05 * jax.random.normal(ks[7], (1, BOTTLENECK_DIM), jnp.float32),
        g2=1.0 + 0.05 * jax.random.normal(ks[8], (1, BOTTLENECK_DIM), jnp.float32),
        beta2=0.05 * jax.random.normal(ks[9], (1, BOTTLENECK_DIM), jnp.float32),
    )


def reference_forward(params, h_states, seq_start_end, end_pos):
    """Pure-JAX, full-precision reference mirroring the PyTorch forward (with biases)."""
    h_flat = h_states.reshape(-1, H_DIM)
    w1 = jnp.concatenate([params["w1e"], params["w1h"]], axis=0)
    outs = []
    for (start, end) in seq_start_end:
        start, end = int(start), int(end)
        P = end - start
        curr_h = h_flat[start:end]
        curr_pos = end_pos[start:end]
        hid1 = jnp.tile(curr_h, (P, 1))
        rel = jnp.tile(curr_pos, (P, 1)) - jnp.repeat(curr_pos, P, axis=0)
        emb = rel @ params["wse"] + params["bse"]
        x = jnp.concatenate([emb, hid1], axis=1)
        z1 = x @ w1 + params["b1"]
        m = z1.mean(0, keepdims=True)
        v = ((z1 - m) ** 2).mean(0, keepdims=True)
        z1 = jnp.maximum((z1 - m) / jnp.sqrt(v + BN_EPS) * params["g1"] + params["beta1"], 0.0)
        z2 = z1 @ params["w2"] + params["b2"]
        m = z2.mean(0, keepdims=True)
        v = ((z2 - m) ** 2).mean(0, keepdims=True)
        z2 = jnp.maximum((z2 - m) / jnp.sqrt(v + BN_EPS) * params["g2"] + params["beta2"], 0.0)
        outs.append(z2.reshape(P, P, -1).max(axis=1))
    return jnp.concatenate(outs, axis=0)


def _check(params, h_states, seq_start_end, end_pos, tol):
    out = jax.block_until_ready(
        pool_hidden_net_forward(params, h_states, seq_start_end, end_pos))
    ref = reference_forward(params, h_states, seq_start_end, end_pos)
    assert out.shape == ref.shape
    max_err = float(jnp.max(jnp.abs(out - ref)))
    if max_err > tol:
        raise AssertionError(f"kernel mismatch vs reference, max err {max_err}")
    return out


if __name__ == "__main__":
    key = jax.random.PRNGKey(0)
    pkey, hkey, ekey, h2key, e2key = jax.random.split(key, 5)
    params = init_params(pkey)

    # Test 1: three sequences of 4, 3, 3 pedestrians (single i-tile per sequence).
    batch = 10
    seq_start_end = [(0, 4), (4, 7), (7, 10)]
    h_states = jax.random.normal(hkey, (1, batch, H_DIM), jnp.float32)
    end_pos = jax.random.normal(ekey, (batch, 2), jnp.float32)
    # bf16 MXU operands bound the error at ~1e-2..3e-2; real bugs give O(1) errors.
    out = _check(params, h_states, seq_start_end, end_pos, tol=1e-1)
    assert out.shape == (batch, BOTTLENECK_DIM)

    # Test 2: one 41-pedestrian sequence -> P_pad=48, exercises the multi-tile loop.
    batch2 = 41
    seq2 = [(0, batch2)]
    h2 = jax.random.normal(h2key, (1, batch2, H_DIM), jnp.float32)
    e2 = jax.random.normal(e2key, (batch2, 2), jnp.float32)
    out2 = _check(params, h2, seq2, e2, tol=1e-1)
    assert out2.shape == (batch2, BOTTLENECK_DIM)

    print("KERNEL_OK")
</pallas_src>

<mosaic_0001>
module attributes {stable_mosaic.version = 11 : i64} {
  func.func @pool_kernel(%arg0: i32, %arg1: memref<3xi32, #tpu.memory_space<smem>>, %arg2: memref<1x8x2xf32, #tpu.memory_space<vmem>>, %arg3: memref<1x8x32xf32, #tpu.memory_space<vmem>>, %arg4: memref<2x512xf32, #tpu.memory_space<vmem>>, %arg5: memref<32x512xf32, #tpu.memory_space<vmem>>, %arg6: memref<1x512xf32, #tpu.memory_space<vmem>>, %arg7: memref<1x512xf32, #tpu.memory_space<vmem>>, %arg8: memref<512x128xbf16, #tpu.memory_space<vmem>>, %arg9: memref<1x128xf32, #tpu.memory_space<vmem>>, %arg10: memref<1x128xf32, #tpu.memory_space<vmem>>, %arg11: memref<1x8x128xf32, #tpu.memory_space<vmem>>, %arg12: memref<64x128xf32, #tpu.memory_space<vmem>>, %arg13: memref<8x512xf32, #tpu.memory_space<vmem>>, %arg14: memref<1x128xf32, #tpu.memory_space<vmem>>, %arg15: memref<1x128xf32, #tpu.memory_space<vmem>>) attributes {dimension_semantics = [#tpu.dimension_semantics<parallel>], iteration_bounds = array<i64: 3>, scalar_prefetch = 1 : i64, scratch_operands = 4 : i64, tpu.core_type = #tpu.core_type<tc>, window_params = [{transform_indices = @transform_0, window_bounds = array<i64: 1, 8, 2>}, {transform_indices = @transform_1, window_bounds = array<i64: 1, 8, 32>}, {pipeline_mode = #tpu.pipeline_mode<synchronous>, transform_indices = @transform_2, window_bounds = array<i64: 2, 512>}, {pipeline_mode = #tpu.pipeline_mode<synchronous>, transform_indices = @transform_3, window_bounds = array<i64: 32, 512>}, {pipeline_mode = #tpu.pipeline_mode<synchronous>, transform_indices = @transform_4, window_bounds = array<i64: 1, 512>}, {pipeline_mode = #tpu.pipeline_mode<synchronous>, transform_indices = @transform_5, window_bounds = array<i64: 1, 512>}, {pipeline_mode = #tpu.pipeline_mode<synchronous>, transform_indices = @transform_6, window_bounds = array<i64: 512, 128>}, {pipeline_mode = #tpu.pipeline_mode<synchronous>, transform_indices = @transform_7, window_bounds = array<i64: 1, 128>}, {pipeline_mode = #tpu.pipeline_mode<synchronous>, transform_indices = @transform_8, window_bounds = array<i64: 1, 128>}, {transform_indices = @transform_9, window_bounds = array<i64: 1, 8, 128>}]} {
    %0 = arith.index_cast %arg0 : i32 to index
    %1 = memref.load %arg1[%0] : memref<3xi32, #tpu.memory_space<smem>>
    %c1_i32 = arith.constant 1 : i32
    %2 = arith.maxsi %1, %c1_i32 : i32
    %3 = arith.sitofp %2 : i32 to f32
    %cst = arith.constant 1.000000e+00 : f32
    %4 = arith.divf %cst, %3 : f32
    %5 = arith.mulf %4, %4 : f32
    %c0 = arith.constant 0 : index
    %c0_0 = arith.constant 0 : index
    %c0_1 = arith.constant 0 : index
    %6 = vector.load %arg2[%c0, %c0_0, %c0_1] : memref<1x8x2xf32, #tpu.memory_space<vmem>>, vector<1x8x2xf32>
    %7 = vector.shape_cast %6 : vector<1x8x2xf32> to vector<8x2xf32>
    %c0_2 = arith.constant 0 : index
    %c0_3 = arith.constant 0 : index
    %c0_4 = arith.constant 0 : index
    %8 = vector.load %arg3[%c0_2, %c0_3, %c0_4] : memref<1x8x32xf32, #tpu.memory_space<vmem>>, vector<1x8x32xf32>
    %9 = vector.shape_cast %8 : vector<1x8x32xf32> to vector<8x32xf32>
    %c0_5 = arith.constant 0 : index
    %c0_6 = arith.constant 0 : index
    %10 = vector.load %arg4[%c0_5, %c0_6] : memref<2x512xf32, #tpu.memory_space<vmem>>, vector<2x512xf32>
    %11 = vector.extract_strided_slice %7 {offsets = [0, 0], sizes = [8, 1], strides = [1, 1]} : vector<8x2xf32> to vector<8x1xf32>
    %12 = vector.extract_strided_slice %10 {offsets = [0, 0], sizes = [1, 512], strides = [1, 1]} : vector<2x512xf32> to vector<1x512xf32>
    %13 = vector.broadcast %11 : vector<8x1xf32> to vector<8x512xf32>
    %14 = vector.broadcast %12 : vector<1x512xf32> to vector<8x512xf32>
    %15 = arith.mulf %13, %14 : vector<8x512xf32>
    %16 = vector.extract_strided_slice %7 {offsets = [0, 1], sizes = [8, 1], strides = [1, 1]} : vector<8x2xf32> to vector<8x1xf32>
    %17 = vector.extract_strided_slice %10 {offsets = [1, 0], sizes = [1, 512], strides = [1, 1]} : vector<2x512xf32> to vector<1x512xf32>
    %18 = vector.broadcast %16 : vector<8x1xf32> to vector<8x512xf32>
    %19 = vector.broadcast %17 : vector<1x512xf32> to vector<8x512xf32>
    %20 = arith.mulf %18, %19 : vector<8x512xf32>
    %21 = arith.addf %15, %20 : vector<8x512xf32>
    %c0_7 = arith.constant 0 : index
    %c0_8 = arith.constant 0 : index
    %22 = vector.load %arg5[%c0_7, %c0_8] : memref<32x512xf32, #tpu.memory_space<vmem>>, vector<32x512xf32>
    %cst_9 = arith.constant dense<0.000000e+00> : vector<8x512xf32>
    %23 = tpu.matmul %9, %22, %cst_9 {dimension_numbers = #tpu.dot_dimension_numbers<[1], [0], [0], [1], [0, 0, 1, 1], [], []>} : vector<8x32xf32>, vector<32x512xf32>, vector<8x512xf32> -> vector<8x512xf32>
    %24 = arith.addf %21, %23 : vector<8x512xf32>
    %25 = tpu.iota {dimensions = array<i32: 0>} : vector<8x1xi32>
    %26 = vector.broadcast %2 : i32 to vector<8x1xi32>
    %27 = arith.cmpi slt, %25, %26 : vector<8x1xi32>
    %28 = arith.extui %27 : vector<8x1xi1> to vector<8x1xi32>
    %29 = arith.sitofp %28 : vector<8x1xi32> to vector<8x1xf32>
    %30 = vector.broadcast %29 : vector<8x1xf32> to vector<8x512xf32>
    %31 = arith.mulf %24, %30 : vector<8x512xf32>
    %cst_10 = arith.constant dense<0.000000e+00> : vector<512xf32>
    %32 = vector.multi_reduction <add>, %31, %cst_10 [0] : vector<8x512xf32> to vector<512xf32>
    %33 = vector.shape_cast %32 : vector<512xf32> to vector<1x512xf32>
    %34 = vector.broadcast %4 : f32 to vector<1x512xf32>
    %35 = arith.mulf %33, %34 : vector<1x512xf32>
    %36 = vector.broadcast %29 : vector<8x1xf32> to vector<8x512xf32>
    %37 = arith.mulf %21, %36 : vector<8x512xf32>
    %cst_11 = arith.constant dense<0.000000e+00> : vector<512xf32>
    %38 = vector.multi_reduction <add>, %37, %cst_11 [0] : vector<8x512xf32> to vector<512xf32>
    %39 = vector.shape_cast %38 : vector<512xf32> to vector<1x512xf32>
    %40 = vector.broadcast %4 : f32 to vector<1x512xf32>
    %41 = arith.mulf %39, %40 : vector<1x512xf32>
    %42 = vector.broadcast %35 : vector<1x512xf32> to vector<8x512xf32>
    %43 = arith.subf %24, %42 : vector<8x512xf32>
    %44 = vector.broadcast %29 : vector<8x1xf32> to vector<8x512xf32>
    %45 = arith.mulf %43, %44 : vector<8x512xf32>
    %46 = vector.broadcast %41 : vector<1x512xf32> to vector<8x512xf32>
    %47 = arith.subf %21, %46 : vector<8x512xf32>
    %48 = vector.broadcast %29 : vector<8x1xf32> to vector<8x512xf32>
    %49 = arith.mulf %47, %48 : vector<8x512xf32>
    %50 = arith.mulf %45, %45 : vector<8x512xf32>
    %cst_12 = arith.constant dense<0.000000e+00> : vector<512xf32>
    %51 = vector.multi_reduction <add>, %50, %cst_12 [0] : vector<8x512xf32> to vector<512xf32>
    %52 = vector.shape_cast %51 : vector<512xf32> to vector<1x512xf32>
    %53 = arith.mulf %49, %49 : vector<8x512xf32>
    %cst_13 = arith.constant dense<0.000000e+00> : vector<512xf32>
    %54 = vector.multi_reduction <add>, %53, %cst_13 [0] : vector<8x512xf32> to vector<512xf32>
    %55 = vector.shape_cast %54 : vector<512xf32> to vector<1x512xf32>
    %56 = arith.addf %52, %55 : vector<1x512xf32>
    %57 = vector.broadcast %4 : f32 to vector<1x512xf32>
    %58 = arith.mulf %56, %57 : vector<1x512xf32>
    %cst_14 = arith.constant 9.99999974E-6 : f32
    %59 = vector.broadcast %cst_14 : f32 to vector<1x512xf32>
    %60 = arith.addf %58, %59 : vector<1x512xf32>
    %61 = math.rsqrt %60 : vector<1x512xf32>
    %c0_15 = arith.constant 0 : index
    %c0_16 = arith.constant 0 : index
    %62 = vector.load %arg6[%c0_15, %c0_16] : memref<1x512xf32, #tpu.memory_space<vmem>>, vector<1x512xf32>
    %63 = arith.mulf %61, %62 : vector<1x512xf32>
    %64 = vector.broadcast %35 : vector<1x512xf32> to vector<8x512xf32>
    %65 = arith.subf %24, %64 : vector<8x512xf32>
    %66 = vector.broadcast %63 : vector<1x512xf32> to vector<8x512xf32>
    %67 = arith.mulf %65, %66 : vector<8x512xf32>
    %c0_17 = arith.constant 0 : index
    %c0_18 = arith.constant 0 : index
    %68 = vector.load %arg7[%c0_17, %c0_18] : memref<1x512xf32, #tpu.memory_space<vmem>>, vector<1x512xf32>
    %69 = vector.broadcast %68 : vector<1x512xf32> to vector<8x512xf32>
    %70 = arith.addf %67, %69 : vector<8x512xf32>
    %cst_19 = arith.constant -1.000000e+09 : f32
    %71 = vector.shape_cast %27 : vector<8x1xi1> to vector<8x1xi1>
    %72 = vector.broadcast %71 : vector<8x1xi1> to vector<8x512xi1>
    %73 = vector.broadcast %cst_19 : f32 to vector<8x512xf32>
    %74 = arith.select %72, %70, %73 : vector<8x512xi1>, vector<8x512xf32>
    %75 = vector.broadcast %41 : vector<1x512xf32> to vector<8x512xf32>
    %76 = arith.subf %21, %75 : vector<8x512xf32>
    %77 = vector.broadcast %63 : vector<1x512xf32> to vector<8x512xf32>
    %78 = arith.mulf %76, %77 : vector<8x512xf32>
    %cst_20 = arith.constant 1.000000e+09 : f32
    %79 = vector.shape_cast %27 : vector<8x1xi1> to vector<8x1xi1>
    %80 = vector.broadcast %79 : vector<8x1xi1> to vector<8x512xi1>
    %81 = vector.broadcast %cst_20 : f32 to vector<8x512xf32>
    %82 = arith.select %80, %78, %81 : vector<8x512xi1>, vector<8x512xf32>
    %c0_21 = arith.constant 0 : index
    %c0_22 = arith.constant 0 : index
    %83 = vector.load %arg13[%c0_21, %c0_22] : memref<8x512xf32, #tpu.memory_space<vmem>>, vector<8x512xf32>
    tpu.vector_store %arg13[%c0_21, %c0_22], %82 {strides = array<i32>} : memref<8x512xf32, #tpu.memory_space<vmem>>, vector<8x512xf32>,
    %c0_23 = arith.constant 0 : index
    %c0_24 = arith.constant 0 : index
    %84 = vector.load %arg8[%c0_23, %c0_24] : memref<512x128xbf16, #tpu.memory_space<vmem>>, vector<512x128xbf16>
    %cst_25 = arith.constant 0.000000e+00 : f32
    %85 = vector.broadcast %cst_25 : f32 to vector<1x128xf32>
    %c0_26 = arith.constant 0 : index
    %c0_27 = arith.constant 0 : index
    %86 = vector.load %arg14[%c0_26, %c0_27] : memref<1x128xf32, #tpu.memory_space<vmem>>, vector<1x128xf32>
    tpu.vector_store %arg14[%c0_26, %c0_27], %85 {strides = array<i32>} : memref<1x128xf32, #tpu.memory_space<vmem>>, vector<1x128xf32>,
    %cst_28 = arith.constant 0.000000e+00 : f32
    %87 = vector.broadcast %cst_28 : f32 to vector<1x128xf32>
    %c0_29 = arith.constant 0 : index
    %c0_30 = arith.constant 0 : index
    %88 = vector.load %arg15[%c0_29, %c0_30] : memref<1x128xf32, #tpu.memory_space<vmem>>, vector<1x128xf32>
    tpu.vector_store %arg15[%c0_29, %c0_30], %87 {strides = array<i32>} : memref<1x128xf32, #tpu.memory_space<vmem>>, vector<1x128xf32>,
    %c0_i32 = arith.constant 0 : i32
    %c8_i32 = arith.constant 8 : i32
    %89 = arith.muli %c0_i32, %c8_i32 : i32
    %90 = tpu.assume_multiple %89, 8 : i32
    %c64_i32 = arith.constant 64 : i32
    %91 = arith.muli %c0_i32, %c64_i32 : i32
    %92 = tpu.assume_multiple %91, 64 : i32
    %93 = arith.index_cast %90 : i32 to index
    %c0_31 = arith.constant 0 : index
    %94 = vector.load %arg13[%93, %c0_31] : memref<8x512xf32, #tpu.memory_space<vmem>>, vector<8x512xf32>
    %95 = vector.shape_cast %74 : vector<8x512xf32> to vector<1x8x512xf32>
    %96 = vector.shape_cast %94 : vector<8x512xf32> to vector<8x1x512xf32>
    %97 = vector.broadcast %95 : vector<1x8x512xf32> to vector<8x8x512xf32>
    %98 = vector.broadcast %96 : vector<8x1x512xf32> to vector<8x8x512xf32>
    %99 = arith.subf %97, %98 : vector<8x8x512xf32>
    %cst_32 = arith.constant 0.000000e+00 : f32
    %100 = vector.broadcast %cst_32 : f32 to vector<8x8x512xf32>
    %101 = arith.maximumf %99, %100 : vector<8x8x512xf32>
    %102 = vector.shape_cast %101 : vector<8x8x512xf32> to vector<64x512xf32>
    %103 = arith.truncf %102 : vector<64x512xf32> to vector<64x512xbf16>
    %cst_33 = arith.constant dense<0.000000e+00> : vector<64x128xf32>
    %104 = tpu.matmul %103, %84, %cst_33 {dimension_numbers = #tpu.dot_dimension_numbers<[1], [0], [0], [1], [0, 0, 1, 1], [], []>} : vector<64x512xbf16>, vector<512x128xbf16>, vector<64x128xf32> -> vector<64x128xf32>
    %c0_34 = arith.constant 0 : index
    %c0_35 = arith.constant 0 : index
    %105 = vector.load %arg14[%c0_34, %c0_35] : memref<1x128xf32, #tpu.memory_space<vmem>>, vector<1x128xf32>
    %cst_36 = arith.constant dense<0.000000e+00> : vector<128xf32>
    %106 = vector.multi_reduction <add>, %104, %cst_36 [0] : vector<64x128xf32> to vector<128xf32>
    %107 = vector.shape_cast %106 : vector<128xf32> to vector<1x128xf32>
    %108 = arith.addf %105, %107 : vector<1x128xf32>
    %c0_37 = arith.constant 0 : index
    %c0_38 = arith.constant 0 : index
    %109 = vector.load %arg14[%c0_37, %c0_38] : memref<1x128xf32, #tpu.memory_space<vmem>>, vector<1x128xf32>
    tpu.vector_store %arg14[%c0_37, %c0_38], %108 {strides = array<i32>} : memref<1x128xf32, #tpu.memory_space<vmem>>, vector<1x128xf32>,
    %c0_39 = arith.constant 0 : index
    %c0_40 = arith.constant 0 : index
    %110 = vector.load %arg15[%c0_39, %c0_40] : memref<1x128xf32, #tpu.memory_space<vmem>>, vector<1x128xf32>
    %111 = arith.mulf %104, %104 : vector<64x128xf32>
    %cst_41 = arith.constant dense<0.000000e+00> : vector<128xf32>
    %112 = vector.multi_reduction <add>, %111, %cst_41 [0] : vector<64x128xf32> to vector<128xf32>
    %113 = vector.shape_cast %112 : vector<128xf32> to vector<1x128xf32>
    %114 = arith.addf %110, %113 : vector<1x128xf32>
    %c0_42 = arith.constant 0 : index
    %c0_43 = arith.constant 0 : index
    %115 = vector.load %arg15[%c0_42, %c0_43] : memref<1x128xf32, #tpu.memory_space<vmem>>, vector<1x128xf32>
    tpu.vector_store %arg15[%c0_42, %c0_43], %114 {strides = array<i32>} : memref<1x128xf32, #tpu.memory_space<vmem>>, vector<1x128xf32>,
    %116 = arith.index_cast %92 : i32 to index
    %c0_44 = arith.constant 0 : index
    %117 = vector.load %arg12[%116, %c0_44] : memref<64x128xf32, #tpu.memory_space<vmem>>, vector<64x128xf32>
    tpu.vector_store %arg12[%116, %c0_44], %104 {strides = array<i32>} : memref<64x128xf32, #tpu.memory_space<vmem>>, vector<64x128xf32>,
    %c1_i32_45 = arith.constant 1 : i32
    %c0_46 = arith.constant 0 : index
    %c0_47 = arith.constant 0 : index
    %118 = vector.load %arg14[%c0_46, %c0_47] : memref<1x128xf32, #tpu.memory_space<vmem>>, vector<1x128xf32>
    %119 = vector.broadcast %5 : f32 to vector<1x128xf32>
    %120 = arith.mulf %118, %119 : vector<1x128xf32>
    %c0_48 = arith.constant 0 : index
    %c0_49 = arith.constant 0 : index
    %121 = vector.load %arg15[%c0_48, %c0_49] : memref<1x128xf32, #tpu.memory_space<vmem>>, vector<1x128xf32>
    %122 = vector.broadcast %5 : f32 to vector<1x128xf32>
    %123 = arith.mulf %121, %122 : vector<1x128xf32>
    %124 = arith.mulf %120, %120 : vector<1x128xf32>
    %125 = arith.subf %123, %124 : vector<1x128xf32>
    %cst_50 = arith.constant 9.99999974E-6 : f32
    %126 = vector.broadcast %cst_50 : f32 to vector<1x128xf32>
    %127 = arith.addf %125, %126 : vector<1x128xf32>
    %128 = math.rsqrt %127 : vector<1x128xf32>
    %c0_51 = arith.constant 0 : index
    %c0_52 = arith.constant 0 : index
    %129 = vector.load %arg9[%c0_51, %c0_52] : memref<1x128xf32, #tpu.memory_space<vmem>>, vector<1x128xf32>
    %130 = arith.mulf %128, %129 : vector<1x128xf32>
    %c0_53 = arith.constant 0 : index
    %c0_54 = arith.constant 0 : index
    %131 = vector.load %arg10[%c0_53, %c0_54] : memref<1x128xf32, #tpu.memory_space<vmem>>, vector<1x128xf32>
    %132 = arith.mulf %120, %130 : vector<1x128xf32>
    %133 = arith.subf %131, %132 : vector<1x128xf32>
    %c0_55 = arith.constant 0 : index
    %c0_56 = arith.constant 0 : index
    %134 = vector.load %arg12[%c0_55, %c0_56] : memref<64x128xf32, #tpu.memory_space<vmem>>, vector<64x128xf32>
    %135 = vector.broadcast %130 : vector<1x128xf32> to vector<64x128xf32>
    %136 = arith.mulf %134, %135 : vector<64x128xf32>
    %137 = vector.broadcast %133 : vector<1x128xf32> to vector<64x128xf32>
    %138 = arith.addf %136, %137 : vector<64x128xf32>
    %cst_57 = arith.constant 0.000000e+00 : f32
    %139 = vector.broadcast %cst_57 : f32 to vector<64x128xf32>
    %140 = arith.maximumf %138, %139 : vector<64x128xf32>
    %141 = vector.shape_cast %140 : vector<64x128xf32> to vector<8x8x128xf32>
    %142 = vector.shape_cast %29 : vector<8x1xf32> to vector<1x8x1xf32>
    %143 = vector.broadcast %142 : vector<1x8x1xf32> to vector<8x8x128xf32>
    %144 = arith.mulf %141, %143 : vector<8x8x128xf32>
    %cst_58 = arith.constant dense<0xFF800000> : vector<8x128xf32>
    %145 = vector.multi_reduction <maximumf>, %144, %cst_58 [1] : vector<8x8x128xf32> to vector<8x128xf32>
    %c0_59 = arith.constant 0 : index
    %c0_60 = arith.constant 0 : index
    %c0_61 = arith.constant 0 : index
    %146 = vector.load %arg11[%c0_59, %c0_60, %c0_61] : memref<1x8x128xf32, #tpu.memory_space<vmem>>, vector<1x8x128xf32>
    %147 = vector.shape_cast %146 : vector<1x8x128xf32> to vector<8x128xf32>
    %148 = vector.shape_cast %145 : vector<8x128xf32> to vector<1x8x128xf32>
    tpu.vector_store %arg11[%c0_59, %c0_60, %c0_61], %148 {strides = array<i32>} : memref<1x8x128xf32, #tpu.memory_space<vmem>>, vector<1x8x128xf32>,
    return
  }
  func.func @transform_0(%arg0: i32, %arg1: memref<3xi32, #tpu.memory_space<smem>>) -> (i32, i32, i32) {
    %c0_i32 = arith.constant 0 : i32
    %c0_i32_0 = arith.constant 0 : i32
    %c0_i32_1 = arith.constant 0 : i32
    return %arg0, %c0_i32, %c0_i32_0 : i32, i32, i32
  }
  func.func @transform_1(%arg0: i32, %arg1: memref<3xi32, #tpu.memory_space<smem>>) -> (i32, i32, i32) {
    %c0_i32 = arith.constant 0 : i32
    %c0_i32_0 = arith.constant 0 : i32
    %c0_i32_1 = arith.constant 0 : i32
    return %arg0, %c0_i32, %c0_i32_0 : i32, i32, i32
  }
  func.func @transform_2(%arg0: i32, %arg1: memref<3xi32, #tpu.memory_space<smem>>) -> (i32, i32) {
    %c0_i32 = arith.constant 0 : i32
    %c0_i32_0 = arith.constant 0 : i32
    %c0_i32_1 = arith.constant 0 : i32
    return %c0_i32, %c0_i32_0 : i32, i32
  }
  func.func @transform_3(%arg0: i32, %arg1: memref<3xi32, #tpu.memory_space<smem>>) -> (i32, i32) {
    %c0_i32 = arith.constant 0 : i32
    %c0_i32_0 = arith.constant 0 : i32
    %c0_i32_1 = arith.constant 0 : i32
    return %c0_i32, %c0_i32_0 : i32, i32
  }
  func.func @transform_4(%arg0: i32, %arg1: memref<3xi32, #tpu.memory_space<smem>>) -> (i32, i32) {
    %c0_i32 = arith.constant 0 : i32
    %c0_i32_0 = arith.constant 0 : i32
    %c0_i32_1 = arith.constant 0 : i32
    return %c0_i32, %c0_i32_0 : i32, i32
  }
  func.func @transform_5(%arg0: i32, %arg1: memref<3xi32, #tpu.memory_space<smem>>) -> (i32, i32) {
    %c0_i32 = arith.constant 0 : i32
    %c0_i32_0 = arith.constant 0 : i32
    %c0_i32_1 = arith.constant 0 : i32
    return %c0_i32, %c0_i32_0 : i32, i32
  }
  func.func @transform_6(%arg0: i32, %arg1: memref<3xi32, #tpu.memory_space<smem>>) -> (i32, i32) {
    %c0_i32 = arith.constant 0 : i32
    %c0_i32_0 = arith.constant 0 : i32
    %c0_i32_1 = arith.constant 0 : i32
    return %c0_i32, %c0_i32_0 : i32, i32
  }
  func.func @transform_7(%arg0: i32, %arg1: memref<3xi32, #tpu.memory_space<smem>>) -> (i32, i32) {
    %c0_i32 = arith.constant 0 : i32
    %c0_i32_0 = arith.constant 0 : i32
    %c0_i32_1 = arith.constant 0 : i32
    return %c0_i32, %c0_i32_0 : i32, i32
  }
  func.func @transform_8(%arg0: i32, %arg1: memref<3xi32, #tpu.memory_space<smem>>) -> (i32, i32) {
    %c0_i32 = arith.constant 0 : i32
    %c0_i32_0 = arith.constant 0 : i32
    %c0_i32_1 = arith.constant 0 : i32
    return %c0_i32, %c0_i32_0 : i32, i32
  }
  func.func @transform_9(%arg0: i32, %arg1: memref<3xi32, #tpu.memory_space<smem>>) -> (i32, i32, i32) {
    %c0_i32 = arith.constant 0 : i32
    %c0_i32_0 = arith.constant 0 : i32
    %c0_i32_1 = arith.constant 0 : i32
    return %arg0, %c0_i32, %c0_i32_0 : i32, i32, i32
  }
}

</mosaic_0001>

<llo_original>
// kernel: tpu_custom_call.1
$region0: #{tpu_custom_call.1}
  #allocation0 [shape = 'u32[]', space=smem, size = 0x4, offset = 0x4, fixed_abs, tag = 'smem constant byte address 0x4 - core index']
  #allocation1 [shape = 'u32[144,128]{1,0:T(1,128)}', space=vmem, size = 0x12000, scoped, tag = 'internal scratch']
  #allocation2 [shape = 'f32[64,128]{1,0:T(8,128)}', space=vmem, size = 0x8000, scoped, tag = 'scratch operand']
  #allocation3 [shape = 'f32[8,512]{1,0:T(8,128)}', space=vmem, size = 0x4000, scoped, tag = 'scratch operand']
  #allocation4 [shape = 'f32[1,128]{1,0:T(1,128)}', space=vmem, size = 0x200, scoped, tag = 'scratch operand']
  #allocation5 [shape = 'f32[1,128]{1,0:T(1,128)}', space=vmem, size = 0x200, scoped, tag = 'scratch operand']
  #allocation6 [shape = 's32[1]{0}', space=sflag, size = 0x4, scoped, tag = 'scoped memory for tpu_custom_call.1']
  #allocation7 [shape = 'u8[512]{0}', space=smem, size = 0x200, scoped, tag = 'prefetched SMEM operand 0']
  %s0 = inlined_call_operand.vmem [shape: s32[3], index: 0, kind: input, shape index: {}]
  %s1 = inlined_call_operand.vmem [shape: f32[3,8,2], index: 1, kind: input, shape index: {}]
  %s2 = inlined_call_operand.vmem [shape: f32[3,8,32], index: 2, kind: input, shape index: {}]
  %s3 = inlined_call_operand.vmem [shape: f32[2,512], index: 3, kind: input, shape index: {}]
  %s4 = inlined_call_operand.hbm [shape: f32[32,512], index: 4, kind: input, shape index: {}]
  %s5 = inlined_call_operand.vmem [shape: f32[1,512], index: 5, kind: input, shape index: {}]
  %s6 = inlined_call_operand.vmem [shape: f32[1,512], index: 6, kind: input, shape index: {}]
  %s7 = inlined_call_operand.hbm [shape: bf16[512,128], index: 7, kind: input, shape index: {}]
  %s8 = inlined_call_operand.vmem [shape: f32[1,128], index: 8, kind: input, shape index: {}]
  %s9 = inlined_call_operand.vmem [shape: f32[1,128], index: 9, kind: input, shape index: {}]
  %s10 = inlined_call_operand.hbm [shape: f32[3,8,128], index: 10, kind: output, shape index: {}]
  %s11 = sld [smem:[#allocation0]]
  $region77: #{tpu_custom_call.1} parent=0
    _
  %s13 = ssub.s32 1, %s11
  %s14 = scalar_select 0, %s13, %s11
  %s15 = sshll.u32 %s0, 4
  %s16 = int_to_ptr.vmem [resolvable:$true] %s15
  %18 = dma.vmem_to_smem %s16, 16, [#allocation7], [#allocation6]
  %19 = dma.done [#allocation6], 16
  %20 = sfence
  $region1: #{tpu_custom_call.1} parent=0
    #allocation8 [shape = 'u8[65536]{0}', space=vmem, size = 0x10000, scoped, tag = 'input window, operand 4, single buffered']
    #allocation9 [shape = 's32[2]{0}', space=sflag, size = 0x8, scoped, tag = 'scoped memory for tpu_custom_call.1']
    #allocation10 [shape = 's32[2]{0}', space=sflag, size = 0x8, scoped, tag = 'scoped memory for tpu_custom_call.1']
    #allocation11 [shape = 'u8[131072]{0}', space=vmem, size = 0x20000, scoped, tag = 'input window, operand 7, single buffered']
    #allocation12 [shape = 's32[1]{0}', space=sflag, size = 0x4, scoped, tag = 'scoped memory for tpu_custom_call.1']
    #allocation13 [shape = 'u8[8192]{0}', space=vmem, size = 0x2000, scoped, tag = 'output window, operand 0']
    %21 = vsyncpa [#allocation9], 0
    %22 = vsyncpa [#allocation12], 0
    %23 = vsyncpa [#allocation10], 0
    %s24 = scalar_lea.sflag [#allocation10], 1
    %25 = vsyncpa %s24, 0
    loop: start=0, step=1, limit=5
    $region2: #{tpu_custom_call.1} parent=1 // loop_pre_header
      _
    $region3: #{tpu_custom_call.1} parent=1 // loop_header
      %s27 = sphi 0, %s31
      %p28 = scmp.ge.s32.totalorder %s27, 5
      %s37 = sphi 0, %s39
      %s40 = sphi 0, %s37
      %s41 = sphi 0, %s40
      %s57 = sphi 0, %s41
      %s63 = sphi 0, %s65
      %s66 = sphi 0, %s63
      %s67 = sphi 0, %s66
      %s83 = sphi 0, %s67
      %s87 = sphi 0, %s87
      %s89 = sphi 0, %s87
      %s90 = sphi 0, %s89
      %s104 = sphi 0, %s90
      %s108 = sphi 0, %s108
      %s110 = sphi 0, %s108
      %s111 = sphi 0, %s110
      %s125 = sphi 0, %s111
      %s129 = sphi 0, %s129
      %s131 = sphi 0, %s129
      %s132 = sphi 0, %s131
      %s146 = sphi 0, %s132
      %s150 = sphi 0, %s150
      %s152 = sphi 0, %s150
      %s153 = sphi 0, %s152
      %s167 = sphi 0, %s153
      %s171 = sphi 0, %s171
      %s173 = sphi 0, %s171
      %s174 = sphi 0, %s173
      %s188 = sphi 0, %s174
      %s192 = sphi 0, %s192
      %s194 = sphi 0, %s192
      %s195 = sphi 0, %s194
      %s209 = sphi 0, %s195
      %s213 = sphi 0, %s213
      %s215 = sphi 0, %s213
      %s216 = sphi 0, %s215
      %s230 = sphi 0, %s216
      %s236 = sphi 0, %s238
      %s239 = sphi 0, %s236
      %s240 = sphi 0, %s239
      %s256 = sphi 0, %s240
    $region4: #{tpu_custom_call.1} parent=1 // loop_header_branch
      %30 = sbr.rel (%p28) target = $region8
    $region5: #{tpu_custom_call.1} parent=1 // loop_body
      %s32 = ssub.s32 %s27, 1
      %s33 = ssub.s32 %s27, 2
      %s34 = sadd.s32 %s27, 1
      %s35 = ssub.s32 %s27, %s34
      %p36 = scmp.eq.s32.totalorder %s35, 0
      %s38 = sadd.s32 %s37, 1
      %s39 = scalar_select %p36, %s37, %s38
      %p42 = pneg %p36
      %p43 = scmp.eq.s32.totalorder %s27, 2
      %p44 = por %p42, %p43
      %p45 = scmp.ne.s32.totalorder %s37, %s40
      %p46 = scmp.eq.s32.totalorder %s27, 0
      %p47 = por %p45, %p46
      %p48 = scmp.ne.s32.totalorder %s37, %s40
      %p49 = scmp.eq.s32.totalorder %s32, 2
      %p50 = por %p48, %p49
      %p51 = scmp.ne.s32.totalorder %s40, %s41
      %p52 = scmp.eq.s32.totalorder %s32, 0
      %p53 = por %p51, %p52
      %p54 = scmp.ne.s32.totalorder %s40, %s41
      %p55 = scmp.eq.s32.totalorder %s33, 2
      %p56 = por %p54, %p55
      %p58 = scmp.ne.s32.totalorder %s41, %s57
      %p59 = scmp.eq.s32.totalorder %s33, 0
      %p60 = por %p58, %p59
      %s61 = ssub.s32 %s27, %s34
      %p62 = scmp.eq.s32.totalorder %s61, 0
      %s64 = sadd.s32 %s63, 1
      %s65 = scalar_select %p62, %s63, %s64
      %p68 = pneg %p62
      %p69 = scmp.eq.s32.totalorder %s27, 2
      %p70 = por %p68, %p69
      %p71 = scmp.ne.s32.totalorder %s63, %s66
      %p72 = scmp.eq.s32.totalorder %s27, 0
      %p73 = por %p71, %p72
      %p74 = scmp.ne.s32.totalorder %s63, %s66
      %p75 = scmp.eq.s32.totalorder %s32, 2
      %p76 = por %p74, %p75
      %p77 = scmp.ne.s32.totalorder %s66, %s67
      %p78 = scmp.eq.s32.totalorder %s32, 0
      %p79 = por %p77, %p78
      %p80 = scmp.ne.s32.totalorder %s66, %s67
      %p81 = scmp.eq.s32.totalorder %s33, 2
      %p82 = por %p80, %p81
      %p84 = scmp.ne.s32.totalorder %s67, %s83
      %p85 = scmp.eq.s32.totalorder %s33, 0
      %p86 = por %p84, %p85
      %s88 = sadd.s32 %s87, 1
      %p91 = scmp.eq.s32.totalorder %s27, 2
      %p92 = scmp.ne.s32.totalorder %s87, %s89
      %p93 = scmp.eq.s32.totalorder %s27, 0
      %p94 = por %p92, %p93
      %p95 = scmp.ne.s32.totalorder %s87, %s89
      %p96 = scmp.eq.s32.totalorder %s32, 2
      %p97 = por %p95, %p96
      %p98 = scmp.ne.s32.totalorder %s89, %s90
      %p99 = scmp.eq.s32.totalorder %s32, 0
      %p100 = por %p98, %p99
      %p101 = scmp.ne.s32.totalorder %s89, %s90
      %p102 = scmp.eq.s32.totalorder %s33, 2
      %p103 = por %p101, %p102
      %p105 = scmp.ne.s32.totalorder %s90, %s104
      %p106 = scmp.eq.s32.totalorder %s33, 0
      %p107 = por %p105, %p106
      %s109 = sadd.s32 %s108, 1
      %p112 = scmp.eq.s32.totalorder %s27, 2
      %p113 = scmp.ne.s32.totalorder %s108, %s110
      %p114 = scmp.eq.s32.totalorder %s27, 0
      %p115 = por %p113, %p114
      %p116 = scmp.ne.s32.totalorder %s108, %s110
      %p117 = scmp.eq.s32.totalorder %s32, 2
      %p118 = por %p116, %p117
      %p119 = scmp.ne.s32.totalorder %s110, %s111
      %p120 = scmp.eq.s32.totalorder %s32, 0
      %p121 = por %p119, %p120
      %p122 = scmp.ne.s32.totalorder %s110, %s111
      %p123 = scmp.eq.s32.totalorder %s33, 2
      %p124 = por %p122, %p123
      %p126 = scmp.ne.s32.totalorder %s111, %s125
      %p127 = scmp.eq.s32.totalorder %s33, 0
      %p128 = por %p126, %p127
      %s130 = sadd.s32 %s129, 1
      %p133 = scmp.eq.s32.totalorder %s27, 2
      %p134 = scmp.ne.s32.totalorder %s129, %s131
      %p135 = scmp.eq.s32.totalorder %s27, 0
      %p136 = por %p134, %p135
      %p137 = scmp.ne.s32.totalorder %s129, %s131
      %p138 = scmp.eq.s32.totalorder %s32, 2
      %p139 = por %p137, %p138
      %p140 = scmp.ne.s32.totalorder %s131, %s132
      %p141 = scmp.eq.s32.totalorder %s32, 0
      %p142 = por %p140, %p141
      %p143 = scmp.ne.s32.totalorder %s131, %s132
      %p144 = scmp.eq.s32.totalorder %s33, 2
      %p145 = por %p143, %p144
      %p147 = scmp.ne.s32.totalorder %s132, %s146
      %p148 = scmp.eq.s32.totalorder %s33, 0
      %p149 = por %p147, %p148
      %s151 = sadd.s32 %s150, 1
      %p154 = scmp.eq.s32.totalorder %s27, 2
      %p155 = scmp.ne.s32.totalorder %s150, %s152
      %p156 = scmp.eq.s32.totalorder %s27, 0
      %p157 = por %p155, %p156
      %p158 = scmp.ne.s32.totalorder %s150, %s152
      %p159 = scmp.eq.s32.totalorder %s32, 2
      %p160 = por %p158, %p159
      %p161 = scmp.ne.s32.totalorder %s152, %s153
      %p162 = scmp.eq.s32.totalorder %s32, 0
      %p163 = por %p161, %p162
      %p164 = scmp.ne.s32.totalorder %s152, %s153
      %p165 = scmp.eq.s32.totalorder %s33, 2
      %p166 = por %p164, %p165
      %p168 = scmp.ne.s32.totalorder %s153, %s167
      %p169 = scmp.eq.s32.totalorder %s33, 0
      %p170 = por %p168, %p169
      %s172 = sadd.s32 %s171, 1
      %p175 = scmp.eq.s32.totalorder %s27, 2
      %p176 = scmp.ne.s32.totalorder %s171, %s173
      %p177 = scmp.eq.s32.totalorder %s27, 0
      %p178 = por %p176, %p177
      %p179 = scmp.ne.s32.totalorder %s171, %s173
      %p180 = scmp.eq.s32.totalorder %s32, 2
      %p181 = por %p179, %p180
      %p182 = scmp.ne.s32.totalorder %s173, %s174
      %p183 = scmp.eq.s32.totalorder %s32, 0
      %p184 = por %p182, %p183
      %p185 = scmp.ne.s32.totalorder %s173, %s174
      %p186 = scmp.eq.s32.totalorder %s33, 2
      %p187 = por %p185, %p186
      %p189 = scmp.ne.s32.totalorder %s174, %s188
      %p190 = scmp.eq.s32.totalorder %s33, 0
      %p191 = por %p189, %p190
      %s193 = sadd.s32 %s192, 1
      %p196 = scmp.eq.s32.totalorder %s27, 2
      %p197 = scmp.ne.s32.totalorder %s192, %s194
      %p198 = scmp.eq.s32.totalorder %s27, 0
      %p199 = por %p197, %p198
      %p200 = scmp.ne.s32.totalorder %s192, %s194
      %p201 = scmp.eq.s32.totalorder %s32, 2
      %p202 = por %p200, %p201
      %p203 = scmp.ne.s32.totalorder %s194, %s195
      %p204 = scmp.eq.s32.totalorder %s32, 0
      %p205 = por %p203, %p204
      %p206 = scmp.ne.s32.totalorder %s194, %s195
      %p207 = scmp.eq.s32.totalorder %s33, 2
      %p208 = por %p206, %p207
      %p210 = scmp.ne.s32.totalorder %s195, %s209
      %p211 = scmp.eq.s32.totalorder %s33, 0
      %p212 = por %p210, %p211
      %s214 = sadd.s32 %s213, 1
      %p217 = scmp.eq.s32.totalorder %s27, 2
      %p218 = scmp.ne.s32.totalorder %s213, %s215
      %p219 = scmp.eq.s32.totalorder %s27, 0
      %p220 = por %p218, %p219
      %p221 = scmp.ne.s32.totalorder %s213, %s215
      %p222 = scmp.eq.s32.totalorder %s32, 2
      %p223 = por %p221, %p222
      %p224 = scmp.ne.s32.totalorder %s215, %s216
      %p225 = scmp.eq.s32.totalorder %s32, 0
      %p226 = por %p224, %p225
      %p227 = scmp.ne.s32.totalorder %s215, %s216
      %p228 = scmp.eq.s32.totalorder %s33, 2
      %p229 = por %p227, %p228
      %p231 = scmp.ne.s32.totalorder %s216, %s230
      %p232 = scmp.eq.s32.totalorder %s33, 0
      %p233 = por %p231, %p232
      %s234 = ssub.s32 %s27, %s34
      %p235 = scmp.eq.s32.totalorder %s234, 0
      %s237 = sadd.s32 %s236, 1
      %s238 = scalar_select %p235, %s236, %s237
      %p241 = pneg %p235
      %p242 = scmp.eq.s32.totalorder %s27, 2
      %p243 = por %p241, %p242
      %p244 = scmp.ne.s32.totalorder %s236, %s239
      %p245 = scmp.eq.s32.totalorder %s27, 0
      %p246 = por %p244, %p245
      %p247 = scmp.ne.s32.totalorder %s236, %s239
      %p248 = scmp.eq.s32.totalorder %s32, 2
      %p249 = por %p247, %p248
      %p250 = scmp.ne.s32.totalorder %s239, %s240
      %p251 = scmp.eq.s32.totalorder %s32, 0
      %p252 = por %p250, %p251
      %p253 = scmp.ne.s32.totalorder %s239, %s240
      %p254 = scmp.eq.s32.totalorder %s33, 2
      %p255 = por %p253, %p254
      %p257 = scmp.ne.s32.totalorder %s240, %s256
      %p258 = scmp.eq.s32.totalorder %s33, 0
      %p259 = por %p257, %p258
      %p260 = scmp.le.s32.totalorder 1, %s27
      %p261 = scmp.lt.s32.totalorder %s27, 4
      %p262 = pnand %p260, %p261
      %p263 = pneg %p262
      // Predicated region
      $region9: #{tpu_custom_call.1} parent=5 // pred_check
        _
      $region10: #{tpu_custom_call.1} parent=5 // pred_check_branch
        %265 = sbr.rel (%p262) target = $region12
      $region11: #{tpu_custom_call.1} parent=5 // pred_region
        %s266 = ssub.s32 %s27, 1
        // Predicated region
        $region13: #{tpu_custom_call.1} parent=11 // pred_check
          %p267 = pneg %p100
        $region14: #{tpu_custom_call.1} parent=11 // pred_check_branch
          %269 = sbr.rel (%p267) target = $region16
        $region15: #{tpu_custom_call.1} parent=11 // pred_region
          _
        $region16: #{tpu_custom_call.1} parent=11 // pred_fallthru
          _
        // Predicated region
        $region17: #{tpu_custom_call.1} parent=11 // pred_check
          %p270 = pneg %p121
        $region18: #{tpu_custom_call.1} parent=11 // pred_check_branch
          %272 = sbr.rel (%p270) target = $region20
        $region19: #{tpu_custom_call.1} parent=11 // pred_region
          %s274 = ssub.s32 2048, 2048
          %275 = vsyncadd [#allocation9], %s274
          %s276 = sshll.u32 [#allocation8], 4
          %s277 = int_to_ptr.vmem [resolvable:$true] %s276
          %282 = dma.hbm_to_vmem [thread:$0]  %s4, 2048, %s277, [#allocation9], 512, 512, 32
        $region20: #{tpu_custom_call.1} parent=11 // pred_fallthru
          _
        // Predicated region
        $region21: #{tpu_custom_call.1} parent=11 // pred_check
          %p283 = pneg %p142
        $region22: #{tpu_custom_call.1} parent=11 // pred_check_branch
          %285 = sbr.rel (%p283) target = $region24
        $region23: #{tpu_custom_call.1} parent=11 // pred_region
          _
        $region24: #{tpu_custom_call.1} parent=11 // pred_fallthru
          _
        // Predicated region
        $region25: #{tpu_custom_call.1} parent=11 // pred_check
          %p286 = pneg %p163
        $region26: #{tpu_custom_call.1} parent=11 // pred_check_branch
          %288 = sbr.rel (%p286) target = $region28
        $region27: #{tpu_custom_call.1} parent=11 // pred_region
          _
        $region28: #{tpu_custom_call.1} parent=11 // pred_fallthru
          _
        // Predicated region
        $region29: #{tpu_custom_call.1} parent=11 // pred_check
          %p289 = pneg %p184
        $region30: #{tpu_custom_call.1} parent=11 // pred_check_branch
          %291 = sbr.rel (%p289) target = $region32
        $region31: #{tpu_custom_call.1} parent=11 // pred_region
          %s293 = ssub.s32 4096, 4096
          %294 = vsyncadd [#allocation12], %s293
          %s295 = sshll.u32 [#allocation11], 4
          %s296 = int_to_ptr.vmem [resolvable:$true] %s295
          %301 = dma.hbm_to_vmem [thread:$0]  %s7, 4096, %s296, [#allocation12], 64, 64, 4
        $region32: #{tpu_custom_call.1} parent=11 // pred_fallthru
          _
        // Predicated region
        $region33: #{tpu_custom_call.1} parent=11 // pred_check
          %p302 = pneg %p205
        $region34: #{tpu_custom_call.1} parent=11 // pred_check_branch
          %304 = sbr.rel (%p302) target = $region36
        $region35: #{tpu_custom_call.1} parent=11 // pred_region
          _
        $region36: #{tpu_custom_call.1} parent=11 // pred_fallthru
          _
        // Predicated region
        $region37: #{tpu_custom_call.1} parent=11 // pred_check
          %p305 = pneg %p226
        $region38: #{tpu_custom_call.1} parent=11 // pred_check_branch
          %307 = sbr.rel (%p305) target = $region40
        $region39: #{tpu_custom_call.1} parent=11 // pred_region
          _
        $region40: #{tpu_custom_call.1} parent=11 // pred_fallthru
          _
      $region12: #{tpu_custom_call.1} parent=5 // pred_fallthru
        _
      %p308 = scmp.lt.s32.totalorder %s27, 3
      // Predicated region
      $region41: #{tpu_custom_call.1} parent=5 // pred_check
        %p309 = pneg %p308
      $region42: #{tpu_custom_call.1} parent=5 // pred_check_branch
        %311 = sbr.rel (%p309) target = $region44
      $region43: #{tpu_custom_call.1} parent=5 // pred_region
        // Predicated region
        $region45: #{tpu_custom_call.1} parent=43 // pred_check
          %p312 = pneg %p47
        $region46: #{tpu_custom_call.1} parent=43 // pred_check_branch
          %314 = sbr.rel (%p312) target = $region48
        $region47: #{tpu_custom_call.1} parent=43 // pred_region
          %p315 = scmp.lt.s32.totalorder %s27, 2
          %s316 = scalar_select %p315, %s27, 2
          %s317 = smul.addr %s316, 8
          %s318 = scalar_lea.vmem %s1, %s317
        $region48: #{tpu_custom_call.1} parent=43 // pred_fallthru
          _
        // Predicated region
        $region49: #{tpu_custom_call.1} parent=43 // pred_check
          %p319 = pneg %p73
        $region50: #{tpu_custom_call.1} parent=43 // pred_check_branch
          %321 = sbr.rel (%p319) target = $region52
        $region51: #{tpu_custom_call.1} parent=43 // pred_region
          %p322 = scmp.lt.s32.totalorder %s27, 2
          %s323 = scalar_select %p322, %s27, 2
          %s324 = smul.addr %s323, 8
          %s325 = scalar_lea.vmem %s2, %s324
        $region52: #{tpu_custom_call.1} parent=43 // pred_fallthru
          _
      $region44: #{tpu_custom_call.1} parent=5 // pred_fallthru
        _
      %p326 = scmp.le.s32.totalorder 1, %s27
      %p327 = scmp.lt.s32.totalorder %s27, 4
      %p328 = pnand %p326, %p327
      %p329 = pneg %p328
      // Predicated region
      $region53: #{tpu_custom_call.1} parent=5 // pred_check
        _
      $region54: #{tpu_custom_call.1} parent=5 // pred_check_branch
        %331 = sbr.rel (%p328) target = $region56
      $region55: #{tpu_custom_call.1} parent=5 // pred_region
        %s332 = ssub.s32 %s27, 1
        // Predicated region
        $region57: #{tpu_custom_call.1} parent=55 // pred_check
          %p333 = pneg %p121
        $region58: #{tpu_custom_call.1} parent=55 // pred_check_branch
          %335 = sbr.rel (%p333) target = $region60
        $region59: #{tpu_custom_call.1} parent=55 // pred_region
          %336 = dma.done [#allocation9], 2048
        $region60: #{tpu_custom_call.1} parent=55 // pred_fallthru
          _
        // Predicated region
        $region61: #{tpu_custom_call.1} parent=55 // pred_check
          %p337 = pneg %p184
        $region62: #{tpu_custom_call.1} parent=55 // pred_check_branch
          %339 = sbr.rel (%p337) target = $region64
        $region63: #{tpu_custom_call.1} parent=55 // pred_region
          %340 = dma.done [#allocation12], 4096
        $region64: #{tpu_custom_call.1} parent=55 // pred_fallthru
          _
        %p341 = scmp.lt.s32.totalorder %s32, 2
        %s342 = scalar_select %p341, %s32, 2
        %s343 = smul.addr %s342, 8
        %s344 = scalar_lea.vmem %s1, %s343
        %p345 = pneg %p53
        %p346 = pneg %p50
        %p347 = scmp.lt.s32.totalorder %s32, 2
        %s348 = scalar_select %p347, %s32, 2
        %s349 = smul.addr %s348, 8
        %s350 = scalar_lea.vmem %s2, %s349
        %p351 = pneg %p79
        %p352 = pneg %p76
        %p353 = pneg %p100
        %p354 = pneg %p97
        %p355 = pneg %p121
        %p356 = pneg %p118
        %p357 = pneg %p142
        %p358 = pneg %p139
        %p359 = pneg %p163
        %p360 = pneg %p160
        %p361 = pneg %p184
        %p362 = pneg %p181
        %p363 = pneg %p205
        %p364 = pneg %p202
        %p365 = pneg %p226
        %p366 = pneg %p223
        %p367 = pneg %p252
        %p368 = pneg %p249
        %s369 = sand.u32 %s239, 1
        %s370 = scalar_lea.sflag [#allocation10], %s369
        %s371 = sand.u32 %s239, 1
        %s372 = smul.addr %s371, 8
        %s373 = scalar_lea.vmem [#allocation13], %s372
        %p374 = scmp.lt.s32.totalorder %s32, 2
        %s375 = scalar_select %p374, %s32, 2
        %s376 = smul.addr %s375, 8
        %s377 = scalar_lea.vmem %s1, %s376
        %p378 = scmp.lt.s32.totalorder %s32, 2
        %s379 = scalar_select %p378, %s32, 2
        %s380 = smul.addr %s379, 8
        %s381 = scalar_lea.vmem %s2, %s380
        %s383 = sld [smem:[#allocation7 + %s32]]
        %p384 = scmp.gt.s32.totalorder %s383, 1
        %s385 = scalar_select %p384, %s383, 1
        %s386 = scvt.s32.f32 %s385
        %v387 = vstv %s386
        %v388 = vrcp.pop %v387
        %s389 = vtos %v388
        %s390 = smul.f32 %s389, %s389
        %v391 = vld [vmem:[%s377] sm:$0xff]
        %v392 = vld [vmem:[%s381] sm:$0xff]
        %v393 = vld [vmem:[%s3] sm:$0xff]
        %395 = vset.pattern.permute.xlu0 0
        %396 = vperm.xlu0 %395, %v391
        %v397 = vpop.permute.xlu0 %396
        %v400 = vlaneseq
        %v401 = vshrl.u32 %v400, 7
        %v402 = vsub.s32 0, %v401
        %v403 = vrot.slane %v393, %v402
        %v404 = vlaneseq
        %v405 = vshrl.u32 %v404, 7
        %v406 = vsub.s32 2, %v405
        %v407 = vrot.slane %v393, %v406
        %v408 = vlaneseq
        %v409 = vshrl.u32 %v408, 7
        %v410 = vsub.s32 4, %v409
        %v411 = vrot.slane %v393, %v410
        %v412 = vlaneseq
        %v413 = vshrl.u32 %v412, 7
        %v414 = vsub.s32 6, %v413
        %v415 = vrot.slane %v393, %v414
        %v420 = vlaneseq
        %v421 = vshrl.u32 %v420, 7
        %v422 = vsub.s32 0, %v421
        %v423 = vrot.slane %v403, %v422
        %v424 = vlaneseq
        %v425 = vshrl.u32 %v424, 7
        %v426 = vsub.s32 0, %v425
        %v427 = vrot.slane %v407, %v426
        %v428 = vlaneseq
        %v429 = vshrl.u32 %v428, 7
        %v430 = vsub.s32 0, %v429
        %v431 = vrot.slane %v411, %v430
        %v432 = vlaneseq
        %v433 = vshrl.u32 %v432, 7
        %v434 = vsub.s32 0, %v433
        %v435 = vrot.slane %v415, %v434
        %v436 = vmul.f32 %v397, %v423
        %v437 = vmul.f32 %v397, %v427
        %v438 = vmul.f32 %v397, %v431
        %v439 = vmul.f32 %v397, %v435
        %440 = vset.pattern.permute.xlu0 1
        %441 = vperm.xlu0 %440, %v391
        %v442 = vpop.permute.xlu0 %441
        %v444 = vlaneseq
        %v445 = vshrl.u32 %v444, 7
        %v446 = vsub.s32 1, %v445
        %v447 = vrot.slane %v393, %v446
        %v448 = vlaneseq
        %v449 = vshrl.u32 %v448, 7
        %v450 = vsub.s32 3, %v449
        %v451 = vrot.slane %v393, %v450
        %v452 = vlaneseq
        %v453 = vshrl.u32 %v452, 7
        %v454 = vsub.s32 5, %v453
        %v455 = vrot.slane %v393, %v454
        %v456 = vlaneseq
        %v457 = vshrl.u32 %v456, 7
        %v458 = vsub.s32 7, %v457
        %v459 = vrot.slane %v393, %v458
        %v464 = vlaneseq
        %v465 = vshrl.u32 %v464, 7
        %v466 = vsub.s32 1, %v465
        %v467 = vrot.slane %v447, %v466
        %v468 = vlaneseq
        %v469 = vshrl.u32 %v468, 7
        %v470 = vsub.s32 1, %v469
        %v471 = vrot.slane %v451, %v470
        %v472 = vlaneseq
        %v473 = vshrl.u32 %v472, 7
        %v474 = vsub.s32 1, %v473
        %v475 = vrot.slane %v455, %v474
        %v476 = vlaneseq
        %v477 = vshrl.u32 %v476, 7
        %v478 = vsub.s32 1, %v477
        %v479 = vrot.slane %v459, %v478
        %v480 = vmul.f32 %v442, %v467
        %v481 = vmul.f32 %v442, %v471
        %v482 = vmul.f32 %v442, %v475
        %v483 = vmul.f32 %v442, %v479
        %v484 = vadd.f32 %v436, %v480
        %v485 = vadd.f32 %v437, %v481
        %v486 = vadd.f32 %v438, %v482
        %v487 = vadd.f32 %v439, %v483
        %v488 = vld [vmem:[#allocation8] sm:$0xff]
        %v489 = vld [vmem:[#allocation8 + $0x8] sm:$0xff]
        %v490 = vld [vmem:[#allocation8 + $0x10] sm:$0xff]
        %v491 = vld [vmem:[#allocation8 + $0x18] sm:$0xff]
        %v492 = vld [vmem:[#allocation8 + $0x20] sm:$0xff]
        %v493 = vld [vmem:[#allocation8 + $0x28] sm:$0xff]
        %v494 = vld [vmem:[#allocation8 + $0x30] sm:$0xff]
        %v495 = vld [vmem:[#allocation8 + $0x38] sm:$0xff]
        %v496 = vld [vmem:[#allocation8 + $0x40] sm:$0xff]
        %v497 = vld [vmem:[#allocation8 + $0x48] sm:$0xff]
        %v498 = vld [vmem:[#allocation8 + $0x50] sm:$0xff]
        %v499 = vld [vmem:[#allocation8 + $0x58] sm:$0xff]
        %v500 = vld [vmem:[#allocation8 + $0x60] sm:$0xff]
        %v501 = vld [vmem:[#allocation8 + $0x68] sm:$0xff]
        %v502 = vld [vmem:[#allocation8 + $0x70] sm:$0xff]
        %v503 = vld [vmem:[#allocation8 + $0x78] sm:$0xff]
        %vm504 = vcmask 261120
        %v506 = vsel %vm504, %v392, 0
        %508 = vmatprep.subr.mxu0 %v489
        %509 = vmatpush1.msra.mxu0 %v488
        %510 = vmatprep.subr.mxu0 %v493
        %511 = vmatpush1.msra.mxu0 %v492
        %512 = vmatprep.subr.mxu0 %v497
        %513 = vmatpush1.msra.mxu0 %v496
        %514 = vmatprep.subr.mxu0 %v501
        %515 = vmatpush1.msra.mxu0 %v500
        %516 = vmatprep.subr.mxu0 0.0
        %517 = vmatpush1.msra.mxu0 0.0
        %518 = vmatprep.subr.mxu0 0.0
        %519 = vmatpush1.msra.mxu0 0.0
        %520 = vmatprep.subr.mxu0 0.0
        %521 = vmatpush1.msra.mxu0 0.0
        %522 = vmatprep.subr.mxu0 0.0
        %523 = vmatpush1.msra.mxu0 0.0
        %524 = vmatprep.subr.mxu0 0.0
        %525 = vmatpush1.msra.mxu0 0.0
        %526 = vmatprep.subr.mxu0 0.0
        %527 = vmatpush1.msra.mxu0 0.0
        %528 = vmatprep.subr.mxu0 0.0
        %529 = vmatpush1.msra.mxu0 0.0
        %530 = vmatprep.subr.mxu0 0.0
        %531 = vmatpush1.msra.mxu0 0.0
        %532 = vmatprep.subr.mxu0 0.0
        %533 = vmatpush1.msra.mxu0 0.0
        %534 = vmatprep.subr.mxu0 0.0
        %535 = vmatpush1.msra.mxu0 0.0
        %536 = vmatprep.subr.mxu0 0.0
        %537 = vmatpush1.msra.mxu0 0.0
        %538 = vmatprep.subr.mxu0 0.0
        %539 = vmatpush1.msra.mxu0 0.0
        %540 = vmatprep.subr.mxu0 0.0
        %541 = vmatpush1.msra.mxu0 0.0
        %542 = vmatprep.subr.mxu0 0.0
        %543 = vmatpush1.msra.mxu0 0.0
        %544 = vmatprep.subr.mxu0 0.0
        %545 = vmatpush1.msra.mxu0 0.0
        %546 = vmatprep.subr.mxu0 0.0
        %547 = vmatpush1.msra.mxu0 0.0
        %548 = vmatprep.subr.mxu0 0.0
        %549 = vmatpush1.msra.mxu0 0.0
        %550 = vmatprep.subr.mxu0 0.0
        %551 = vmatpush1.msra.mxu0 0.0
        %552 = vmatprep.subr.mxu0 0.0
        %553 = vmatpush1.msra.mxu0 0.0
        %554 = vmatprep.subr.mxu0 0.0
        %555 = vmatpush1.msra.mxu0 0.0
        %556 = vmatprep.subr.mxu0 0.0
        %557 = vmatpush1.msra.mxu0 0.0
        %558 = vmatprep.subr.mxu0 0.0
        %559 = vmatpush1.msra.mxu0 0.0
        %560 = vmatprep.subr.mxu0 0.0
        %561 = vmatpush1.msra.mxu0 0.0
        %562 = vmatprep.subr.mxu0 0.0
        %563 = vmatpush1.msra.mxu0 0.0
        %564 = vmatprep.subr.mxu0 0.0
        %565 = vmatpush1.msra.mxu0 0.0
        %566 = vmatprep.subr.mxu0 0.0
        %567 = vmatpush1.msra.mxu0 0.0
        %568 = vmatprep.subr.mxu0 0.0
        %569 = vmatpush1.msra.mxu0 0.0
        %570 = vmatprep.subr.mxu0 0.0
        %571 = vmatpush1.msra.mxu0 0.0
        %572 = vmatprep.mubr.f32.mxu0 0.0
        %573 = vmatmul.mubr.f32.gmra.mrb[0].mxu0 %v506
        %v574 = vpop.f32.mrb[0].mxu0
        %v575 = vadd.f32 0.0, %v574
        %v576 = vpop.f32.mrb[0].mxu0
        %v577 = vadd.f32 0.0, %v576
        %578 = vdwg.mxu0
        %579 = vmatprep.subr.mxu0 %v491
        %580 = vmatpush1.msra.mxu0 %v490
        %581 = vmatprep.subr.mxu0 %v495
        %582 = vmatpush1.msra.mxu0 %v494
        %583 = vmatprep.subr.mxu0 %v499
        %584 = vmatpush1.msra.mxu0 %v498
        %585 = vmatprep.subr.mxu0 %v503
        %586 = vmatpush1.msra.mxu0 %v502
        %587 = vmatprep.subr.mxu0 0.0
        %588 = vmatpush1.msra.mxu0 0.0
        %589 = vmatprep.subr.mxu0 0.0
        %590 = vmatpush1.msra.mxu0 0.0
        %591 = vmatprep.subr.mxu0 0.0
        %592 = vmatpush1.msra.mxu0 0.0
        %593 = vmatprep.subr.mxu0 0.0
        %594 = vmatpush1.msra.mxu0 0.0
        %595 = vmatprep.subr.mxu0 0.0
        %596 = vmatpush1.msra.mxu0 0.0
        %597 = vmatprep.subr.mxu0 0.0
        %598 = vmatpush1.msra.mxu0 0.0
        %599 = vmatprep.subr.mxu0 0.0
        %600 = vmatpush1.msra.mxu0 0.0
        %601 = vmatprep.subr.mxu0 0.0
        %602 = vmatpush1.msra.mxu0 0.0
        %603 = vmatprep.subr.mxu0 0.0
        %604 = vmatpush1.msra.mxu0 0.0
        %605 = vmatprep.subr.mxu0 0.0
        %606 = vmatpush1.msra.mxu0 0.0
        %607 = vmatprep.subr.mxu0 0.0
        %608 = vmatpush1.msra.mxu0 0.0
        %609 = vmatprep.subr.mxu0 0.0
        %610 = vmatpush1.msra.mxu0 0.0
        %611 = vmatprep.subr.mxu0 0.0
        %612 = vmatpush1.msra.mxu0 0.0
        %613 = vmatprep.subr.mxu0 0.0
        %614 = vmatpush1.msra.mxu0 0.0
        %615 = vmatprep.subr.mxu0 0.0
        %616 = vmatpush1.msra.mxu0 0.0
        %617 = vmatprep.subr.mxu0 0.0
        %618 = vmatpush1.msra.mxu0 0.0
        %619 = vmatprep.subr.mxu0 0.0
        %620 = vmatpush1.msra.mxu0 0.0
        %621 = vmatprep.subr.mxu0 0.0
        %622 = vmatpush1.msra.mxu0 0.0
        %623 = vmatprep.subr.mxu0 0.0
        %624 = vmatpush1.msra.mxu0 0.0
        %625 = vmatprep.subr.mxu0 0.0
        %626 = vmatpush1.msra.mxu0 0.0
        %627 = vmatprep.subr.mxu0 0.0
        %628 = vmatpush1.msra.mxu0 0.0
        %629 = vmatprep.subr.mxu0 0.0
        %630 = vmatpush1.msra.mxu0 0.0
        %631 = vmatprep.subr.mxu0 0.0
        %632 = vmatpush1.msra.mxu0 0.0
        %633 = vmatprep.subr.mxu0 0.0
        %634 = vmatpush1.msra.mxu0 0.0
        %635 = vmatprep.subr.mxu0 0.0
        %636 = vmatpush1.msra.mxu0 0.0
        %637 = vmatprep.subr.mxu0 0.0
        %638 = vmatpush1.msra.mxu0 0.0
        %639 = vmatprep.subr.mxu0 0.0
        %640 = vmatpush1.msra.mxu0 0.0
        %641 = vmatprep.subr.mxu0 0.0
        %642 = vmatpush1.msra.mxu0 0.0
        %643 = vmatprep.mubr.f32.mxu0 0.0
        %644 = vmatmul.mubr.f32.gmra.mrb[0].mxu0 %v506
        %v645 = vpop.f32.mrb[0].mxu0
        %v646 = vadd.f32 0.0, %v645
        %v647 = vpop.f32.mrb[0].mxu0
        %v648 = vadd.f32 0.0, %v647
        %649 = vdwg.mxu0
        %v650 = vadd.f32 %v484, %v575
        %v651 = vadd.f32 %v485, %v577
        %v652 = vadd.f32 %v486, %v646
        %v653 = vadd.f32 %v487, %v648
        %v654 = vlaneseq
        %v655 = vshrl.u32 %v654, 7
        %v656 = vstv %s385
        %vm657 = vcmp.lt.s32.totalorder %v655, %v656
        %v658 = vsel %vm657, 1, 0
        %v659 = vcvt.s32.f32 %v658
        %v660 = vmul.f32 %v650, %v659
        %v661 = vmul.f32 %v651, %v659
        %v662 = vmul.f32 %v652, %v659
        %v663 = vmul.f32 %v653, %v659
        %v664 = vrot.slane %v660, 4
        %v665 = vadd.f32 %v660, %v664
        %v666 = vrot.slane %v665, 2
        %v667 = vadd.f32 %v665, %v666
        %v668 = vrot.slane %v667, 1
        %v669 = vadd.f32 %v667, %v668
        %v670 = vrot.slane %v661, 4
        %v671 = vadd.f32 %v661, %v670
        %v672 = vrot.slane %v671, 2
        %v673 = vadd.f32 %v671, %v672
        %v674 = vrot.slane %v673, 1
        %v675 = vadd.f32 %v673, %v674
        %v676 = vrot.slane %v662, 4
        %v677 = vadd.f32 %v662, %v676
        %v678 = vrot.slane %v677, 2
        %v679 = vadd.f32 %v677, %v678
        %v680 = vrot.slane %v679, 1
        %v681 = vadd.f32 %v679, %v680
        %v682 = vrot.slane %v663, 4
        %v683 = vadd.f32 %v663, %v682
        %v684 = vrot.slane %v683, 2
        %v685 = vadd.f32 %v683, %v684
        %v686 = vrot.slane %v685, 1
        %v687 = vadd.f32 %v685, %v686
        %v688 = vstv %s389
        %v689 = vmul.f32 %v669, %v688
        %v690 = vmul.f32 %v675, %v688
        %v691 = vmul.f32 %v681, %v688
        %v692 = vmul.f32 %v687, %v688
        %v693 = vmul.f32 %v484, %v659
        %v694 = vmul.f32 %v485, %v659
        %v695 = vmul.f32 %v486, %v659
        %v696 = vmul.f32 %v487, %v659
        %v697 = vrot.slane %v693, 4
        %v698 = vadd.f32 %v693, %v697
        %v699 = vrot.slane %v698, 2
        %v700 = vadd.f32 %v698, %v699
        %v701 = vrot.slane %v700, 1
        %v702 = vadd.f32 %v700, %v701
        %v703 = vrot.slane %v694, 4
        %v704 = vadd.f32 %v694, %v703
        %v705 = vrot.slane %v704, 2
        %v706 = vadd.f32 %v704, %v705
        %v707 = vrot.slane %v706, 1
        %v708 = vadd.f32 %v706, %v707
        %v709 = vrot.slane %v695, 4
        %v710 = vadd.f32 %v695, %v709
        %v711 = vrot.slane %v710, 2
        %v712 = vadd.f32 %v710, %v711
        %v713 = vrot.slane %v712, 1
        %v714 = vadd.f32 %v712, %v713
        %v715 = vrot.slane %v696, 4
        %v716 = vadd.f32 %v696, %v715
        %v717 = vrot.slane %v716, 2
        %v718 = vadd.f32 %v716, %v717
        %v719 = vrot.slane %v718, 1
        %v720 = vadd.f32 %v718, %v719
        %v721 = vmul.f32 %v702, %v688
        %v722 = vmul.f32 %v708, %v688
        %v723 = vmul.f32 %v714, %v688
        %v724 = vmul.f32 %v720, %v688
        %v725 = vsub.f32 %v650, %v689
        %v726 = vsub.f32 %v651, %v690
        %v727 = vsub.f32 %v652, %v691
        %v728 = vsub.f32 %v653, %v692
        %v729 = vmul.f32 %v725, %v659
        %v730 = vmul.f32 %v726, %v659
        %v731 = vmul.f32 %v727, %v659
        %v732 = vmul.f32 %v728, %v659
        %v733 = vsub.f32 %v484, %v721
        %v734 = vsub.f32 %v485, %v722
        %v735 = vsub.f32 %v486, %v723
        %v736 = vsub.f32 %v487, %v724
        %v737 = vmul.f32 %v733, %v659
        %v738 = vmul.f32 %v734, %v659
        %v739 = vmul.f32 %v735, %v659
        %v740 = vmul.f32 %v736, %v659
        %v741 = vmul.f32 %v729, %v729
        %v742 = vmul.f32 %v730, %v730
        %v743 = vmul.f32 %v731, %v731
        %v744 = vmul.f32 %v732, %v732
        %v745 = vrot.slane %v741, 4
        %v746 = vadd.f32 %v741, %v745
        %v747 = vrot.slane %v746, 2
        %v748 = vadd.f32 %v746, %v747
        %v749 = vrot.slane %v748, 1
        %v750 = vadd.f32 %v748, %v749
        %v751 = vrot.slane %v742, 4
        %v752 = vadd.f32 %v742, %v751
        %v753 = vrot.slane %v752, 2
        %v754 = vadd.f32 %v752, %v753
        %v755 = vrot.slane %v754, 1
        %v756 = vadd.f32 %v754, %v755
        %v757 = vrot.slane %v743, 4
        %v758 = vadd.f32 %v743, %v757
        %v759 = vrot.slane %v758, 2
        %v760 = vadd.f32 %v758, %v759
        %v761 = vrot.slane %v760, 1
        %v762 = vadd.f32 %v760, %v761
        %v763 = vrot.slane %v744, 4
        %v764 = vadd.f32 %v744, %v763
        %v765 = vrot.slane %v764, 2
        %v766 = vadd.f32 %v764, %v765
        %v767 = vrot.slane %v766, 1
        %v768 = vadd.f32 %v766, %v767
        %v769 = vmul.f32 %v737, %v737
        %v770 = vmul.f32 %v738, %v738
        %v771 = vmul.f32 %v739, %v739
        %v772 = vmul.f32 %v740, %v740
        %v773 = vrot.slane %v769, 4
        %v774 = vadd.f32 %v769, %v773
        %v775 = vrot.slane %v774, 2
        %v776 = vadd.f32 %v774, %v775
        %v777 = vrot.slane %v776, 1
        %v778 = vadd.f32 %v776, %v777
        %v779 = vrot.slane %v770, 4
        %v780 = vadd.f32 %v770, %v779
        %v781 = vrot.slane %v780, 2
        %v782 = vadd.f32 %v780, %v781
        %v783 = vrot.slane %v782, 1
        %v784 = vadd.f32 %v782, %v783
        %v785 = vrot.slane %v771, 4
        %v786 = vadd.f32 %v771, %v785
        %v787 = vrot.slane %v786, 2
        %v788 = vadd.f32 %v786, %v787
        %v789 = vrot.slane %v788, 1
        %v790 = vadd.f32 %v788, %v789
        %v791 = vrot.slane %v772, 4
        %v792 = vadd.f32 %v772, %v791
        %v793 = vrot.slane %v792, 2
        %v794 = vadd.f32 %v792, %v793
        %v795 = vrot.slane %v794, 1
        %v796 = vadd.f32 %v794, %v795
        %v797 = vadd.f32 %v750, %v778
        %v798 = vadd.f32 %v756, %v784
        %v799 = vadd.f32 %v762, %v790
        %v800 = vadd.f32 %v768, %v796
        %v801 = vmul.f32 %v797, %v688
        %v802 = vmul.f32 %v798, %v688
        %v803 = vmul.f32 %v799, %v688
        %v804 = vmul.f32 %v800, %v688
        %v805 = vadd.f32 %v801, 1e-05
        %v806 = vadd.f32 %v802, 1e-05
        %v807 = vadd.f32 %v803, 1e-05
        %v808 = vadd.f32 %v804, 1e-05
        %v809 = vrsqrt.pop %v805
        %v810 = vrsqrt.pop %v806
        %v811 = vrsqrt.pop %v807
        %v812 = vrsqrt.pop %v808
        %v813 = vld [vmem:[%s5] sm:$0xf]
        %v815 = vlaneseq
        %v816 = vshrl.u32 %v815, 7
        %v817 = vsub.s32 0, %v816
        %v818 = vrot.slane %v813, %v817
        %v819 = vlaneseq
        %v820 = vshrl.u32 %v819, 7
        %v821 = vsub.s32 1, %v820
        %v822 = vrot.slane %v813, %v821
        %v823 = vlaneseq
        %v824 = vshrl.u32 %v823, 7
        %v825 = vsub.s32 2, %v824
        %v826 = vrot.slane %v813, %v825
        %v827 = vlaneseq
        %v828 = vshrl.u32 %v827, 7
        %v829 = vsub.s32 3, %v828
        %v830 = vrot.slane %v813, %v829
        %v835 = vmul.f32 %v809, %v818
        %v836 = vmul.f32 %v810, %v822
        %v837 = vmul.f32 %v811, %v826
        %v838 = vmul.f32 %v812, %v830
        %v839 = vlaneseq
        %v840 = vshrl.u32 %v839, 7
        %v841 = vsub.s32 0, %v840
        %v842 = vrot.slane %v835, %v841
        %v843 = vlaneseq
        %v844 = vshrl.u32 %v843, 7
        %v845 = vsub.s32 0, %v844
        %v846 = vrot.slane %v836, %v845
        %v847 = vlaneseq
        %v848 = vshrl.u32 %v847, 7
        %v849 = vsub.s32 0, %v848
        %v850 = vrot.slane %v837, %v849
        %v851 = vlaneseq
        %v852 = vshrl.u32 %v851, 7
        %v853 = vsub.s32 0, %v852
        %v854 = vrot.slane %v838, %v853
        %v855 = vmul.f32 %v725, %v842
        %v856 = vmul.f32 %v726, %v846
        %v857 = vmul.f32 %v727, %v850
        %v858 = vmul.f32 %v728, %v854
        %v859 = vld [vmem:[%s6] sm:$0xf]
        %v861 = vlaneseq
        %v862 = vshrl.u32 %v861, 7
        %v863 = vsub.s32 0, %v862
        %v864 = vrot.slane %v859, %v863
        %v865 = vlaneseq
        %v866 = vshrl.u32 %v865, 7
        %v867 = vsub.s32 1, %v866
        %v868 = vrot.slane %v859, %v867
        %v869 = vlaneseq
        %v870 = vshrl.u32 %v869, 7
        %v871 = vsub.s32 2, %v870
        %v872 = vrot.slane %v859, %v871
        %v873 = vlaneseq
        %v874 = vshrl.u32 %v873, 7
        %v875 = vsub.s32 3, %v874
        %v876 = vrot.slane %v859, %v875
        %v881 = vadd.f32 %v855, %v864
        %v882 = vadd.f32 %v856, %v868
        %v883 = vadd.f32 %v857, %v872
        %v884 = vadd.f32 %v858, %v876
        %vm885 = vcmp.eq.s32.totalorder %v658, 1
        %v886 = vsel %vm885, %v881, -1e+09
        %v887 = vsel %vm885, %v882, -1e+09
        %v888 = vsel %vm885, %v883, -1e+09
        %v889 = vsel %vm885, %v884, -1e+09
        %v890 = vmul.f32 %v733, %v842
        %v891 = vmul.f32 %v734, %v846
        %v892 = vmul.f32 %v735, %v850
        %v893 = vmul.f32 %v736, %v854
        %v894 = vsel %vm885, %v890, 1e+09
        %v895 = vsel %vm885, %v891, 1e+09
        %v896 = vsel %vm885, %v892, 1e+09
        %v897 = vsel %vm885, %v893, 1e+09
        %898 = vst [vmem:[#allocation3] sm:$0xff] %v894
        %899 = vst [vmem:[#allocation3 + $0x8] sm:$0xff] %v895
        %900 = vst [vmem:[#allocation3 + $0x10] sm:$0xff] %v896
        %901 = vst [vmem:[#allocation3 + $0x18] sm:$0xff] %v897
        %v902 = vld [vmem:[#allocation11] sm:$0xf]
        %v903 = vld [vmem:[#allocation11 + $0x4] sm:$0xf]
        %v904 = vld [vmem:[#allocation11 + $0x8] sm:$0xf]
        %v905 = vld [vmem:[#allocation11 + $0xc] sm:$0xf]
        %v906 = vld [vmem:[#allocation11 + $0x10] sm:$0xf]
        %v907 = vld [vmem:[#allocation11 + $0x14] sm:$0xf]
        %v908 = vld [vmem:[#allocation11 + $0x18] sm:$0xf]
        %v909 = vld [vmem:[#allocation11 + $0x1c] sm:$0xf]
        %v910 = vld [vmem:[#allocation11 + $0x20] sm:$0xf]
        %v911 = vld [vmem:[#allocation11 + $0x24] sm:$0xf]
        %v912 = vld [vmem:[#allocation11 + $0x28] sm:$0xf]
        %v913 = vld [vmem:[#allocation11 + $0x2c] sm:$0xf]
        %v914 = vld [vmem:[#allocation11 + $0x30] sm:$0xf]
        %v915 = vld [vmem:[#allocation11 + $0x34] sm:$0xf]
        %v916 = vld [vmem:[#allocation11 + $0x38] sm:$0xf]
        %v917 = vld [vmem:[#allocation11 + $0x3c] sm:$0xf]
        %v918 = vld [vmem:[#allocation11 + $0x40] sm:$0xf]
        %v919 = vld [vmem:[#allocation11 + $0x44] sm:$0xf]
        %v920 = vld [vmem:[#allocation11 + $0x48] sm:$0xf]
        %v921 = vld [vmem:[#allocation11 + $0x4c] sm:$0xf]
        %v922 = vld [vmem:[#allocation11 + $0x50] sm:$0xf]
        %v923 = vld [vmem:[#allocation11 + $0x54] sm:$0xf]
        %v924 = vld [vmem:[#allocation11 + $0x58] sm:$0xf]
        %v925 = vld [vmem:[#allocation11 + $0x5c] sm:$0xf]
        %v926 = vld [vmem:[#allocation11 + $0x60] sm:$0xf]
        %v927 = vld [vmem:[#allocation11 + $0x64] sm:$0xf]
        %v928 = vld [vmem:[#allocation11 + $0x68] sm:$0xf]
        %v929 = vld [vmem:[#allocation11 + $0x6c] sm:$0xf]
        %v930 = vld [vmem:[#allocation11 + $0x70] sm:$0xf]
        %v931 = vld [vmem:[#allocation11 + $0x74] sm:$0xf]
        %v932 = vld [vmem:[#allocation11 + $0x78] sm:$0xf]
        %v933 = vld [vmem:[#allocation11 + $0x7c] sm:$0xf]
        %v934 = vld [vmem:[#allocation11 + $0x80] sm:$0xf]
        %v935 = vld [vmem:[#allocation11 + $0x84] sm:$0xf]
        %v936 = vld [vmem:[#allocation11 + $0x88] sm:$0xf]
        %v937 = vld [vmem:[#allocation11 + $0x8c] sm:$0xf]
        %v938 = vld [vmem:[#allocation11 + $0x90] sm:$0xf]
        %v939 = vld [vmem:[#allocation11 + $0x94] sm:$0xf]
        %v940 = vld [vmem:[#allocation11 + $0x98] sm:$0xf]
        %v941 = vld [vmem:[#allocation11 + $0x9c] sm:$0xf]
        %v942 = vld [vmem:[#allocation11 + $0xa0] sm:$0xf]
        %v943 = vld [vmem:[#allocation11 + $0xa4] sm:$0xf]
        %v944 = vld [vmem:[#allocation11 + $0xa8] sm:$0xf]
        %v945 = vld [vmem:[#allocation11 + $0xac] sm:$0xf]
        %v946 = vld [vmem:[#allocation11 + $0xb0] sm:$0xf]
        %v947 = vld [vmem:[#allocation11 + $0xb4] sm:$0xf]
        %v948 = vld [vmem:[#allocation11 + $0xb8] sm:$0xf]
        %v949 = vld [vmem:[#allocation11 + $0xbc] sm:$0xf]
        %v950 = vld [vmem:[#allocation11 + $0xc0] sm:$0xf]
        %v951 = vld [vmem:[#allocation11 + $0xc4] sm:$0xf]
        %v952 = vld [vmem:[#allocation11 + $0xc8] sm:$0xf]
        %v953 = vld [vmem:[#allocation11 + $0xcc] sm:$0xf]
        %v954 = vld [vmem:[#allocation11 + $0xd0] sm:$0xf]
        %v955 = vld [vmem:[#allocation11 + $0xd4] sm:$0xf]
        %v956 = vld [vmem:[#allocation11 + $0xd8] sm:$0xf]
        %v957 = vld [vmem:[#allocation11 + $0xdc] sm:$0xf]
        %v958 = vld [vmem:[#allocation11 + $0xe0] sm:$0xf]
        %v959 = vld [vmem:[#allocation11 + $0xe4] sm:$0xf]
        %v960 = vld [vmem:[#allocation11 + $0xe8] sm:$0xf]
        %v961 = vld [vmem:[#allocation11 + $0xec] sm:$0xf]
        %v962 = vld [vmem:[#allocation11 + $0xf0] sm:$0xf]
        %v963 = vld [vmem:[#allocation11 + $0xf4] sm:$0xf]
        %v964 = vld [vmem:[#allocation11 + $0xf8] sm:$0xf]
        %v965 = vld [vmem:[#allocation11 + $0xfc] sm:$0xf]
        %966 = vst [vmem:[#allocation4] sm:$0x1] 0.0
        %967 = vst [vmem:[#allocation5] sm:$0x1] 0.0
        %s968 = smul.u32 0, 4
        %s969 = smul.addr %s968, 8
        %s970 = scalar_lea.vmem [#allocation3], %s969
        %v971 = vld [vmem:[%s970] sm:$0xff]
        %v972 = vld [vmem:[%s970 + $0x8] sm:$0xff]
        %v973 = vld [vmem:[%s970 + $0x10] sm:$0xff]
        %v974 = vld [vmem:[%s970 + $0x18] sm:$0xff]
        %v979 = vcombine.low %v971, %v972
        %v980 = vcombine.high %v971, %v972
        %v981 = vcombine.low %v973, %v974
        %v982 = vcombine.high %v973, %v974
        %v984 = vunpack.c.l.s4 1966171168
        %v985 = vunpack.c.0.s8 %v984
        %v986 = vlaneseq
        %v987 = vshrl.u32 %v986, 7
        %v988 = vsub.s32 %v985, %v987
        %v989 = vrot.slane %v979, %v988
        %v991 = vunpack.c.l.s4 1966171168
        %v992 = vunpack.c.0.s8 %v991
        %v993 = vlaneseq
        %v994 = vshrl.u32 %v993, 7
        %v995 = vsub.s32 %v992, %v994
        %v996 = vrot.slane %v980, %v995
        %v998 = vunpack.c.l.s4 1966171168
        %v999 = vunpack.c.0.s8 %v998
        %v1000 = vlaneseq
        %v1001 = vshrl.u32 %v1000, 7
        %v1002 = vsub.s32 %v999, %v1001
        %v1003 = vrot.slane %v981, %v1002
        %v1005 = vunpack.c.l.s4 1966171168
        %v1006 = vunpack.c.0.s8 %v1005
        %v1007 = vlaneseq
        %v1008 = vshrl.u32 %v1007, 7
        %v1009 = vsub.s32 %v1006, %v1008
        %v1010 = vrot.slane %v982, %v1009
        %v1011 = vcombine.low %v989, %v1003
        %v1012 = vcombine.high %v989, %v1003
        %v1013 = vcombine.low %v996, %v1010
        %v1014 = vcombine.high %v996, %v1010
        %v1016 = vunpack.c.l.s4 1966171168
        %v1017 = vunpack.c.0.s8 %v1016
        %v1018 = vlaneseq
        %v1019 = vshrl.u32 %v1018, 7
        %v1020 = vsub.s32 %v1017, %v1019
        %v1021 = vrot.slane %v1011, %v1020
        %v1023 = vunpack.c.l.s4 1966171168
        %v1024 = vunpack.c.0.s8 %v1023
        %v1025 = vlaneseq
        %v1026 = vshrl.u32 %v1025, 7
        %v1027 = vsub.s32 %v1024, %v1026
        %v1028 = vrot.slane %v1013, %v1027
        %v1030 = vunpack.c.l.s4 1966171168
        %v1031 = vunpack.c.0.s8 %v1030
        %v1032 = vlaneseq
        %v1033 = vshrl.u32 %v1032, 7
        %v1034 = vsub.s32 %v1031, %v1033
        %v1035 = vrot.slane %v1012, %v1034
        %v1037 = vunpack.c.l.s4 1966171168
        %v1038 = vunpack.c.0.s8 %v1037
        %v1039 = vlaneseq
        %v1040 = vshrl.u32 %v1039, 7
        %v1041 = vsub.s32 %v1038, %v1040
        %v1042 = vrot.slane %v1014, %v1041
        %v1043 = vcombine.high %v1021, %v1021
        %v1044 = vcombine.high %v1028, %v1028
        %v1045 = vcombine.high %v1035, %v1035
        %v1046 = vcombine.high %v1042, %v1042
        %v1047 = vlaneseq
        %v1048 = vshrl.u32 %v1047, 7
        %v1049 = vsub.s32 0, %v1048
        %v1050 = vrot.slane %v1021, %v1049
        %v1051 = vlaneseq
        %v1052 = vshrl.u32 %v1051, 7
        %v1053 = vsub.s32 1, %v1052
        %v1054 = vrot.slane %v1021, %v1053
        %v1055 = vlaneseq
        %v1056 = vshrl.u32 %v1055, 7
        %v1057 = vsub.s32 2, %v1056
        %v1058 = vrot.slane %v1021, %v1057
        %v1059 = vlaneseq
        %v1060 = vshrl.u32 %v1059, 7
        %v1061 = vsub.s32 3, %v1060
        %v1062 = vrot.slane %v1021, %v1061
        %v1063 = vlaneseq
        %v1064 = vshrl.u32 %v1063, 7
        %v1065 = vsub.s32 0, %v1064
        %v1066 = vrot.slane %v1035, %v1065
        %v1067 = vlaneseq
        %v1068 = vshrl.u32 %v1067, 7
        %v1069 = vsub.s32 1, %v1068
        %v1070 = vrot.slane %v1035, %v1069
        %v1071 = vlaneseq
        %v1072 = vshrl.u32 %v1071, 7
        %v1073 = vsub.s32 2, %v1072
        %v1074 = vrot.slane %v1035, %v1073
        %v1075 = vlaneseq
        %v1076 = vshrl.u32 %v1075, 7
        %v1077 = vsub.s32 3, %v1076
        %v1078 = vrot.slane %v1035, %v1077
        %v1079 = vlaneseq
        %v1080 = vshrl.u32 %v1079, 7
        %v1081 = vsub.s32 0, %v1080
        %v1082 = vrot.slane %v1043, %v1081
        %v1083 = vlaneseq
        %v1084 = vshrl.u32 %v1083, 7
        %v1085 = vsub.s32 1, %v1084
        %v1086 = vrot.slane %v1043, %v1085
        %v1087 = vlaneseq
        %v1088 = vshrl.u32 %v1087, 7
        %v1089 = vsub.s32 2, %v1088
        %v1090 = vrot.slane %v1043, %v1089
        %v1091 = vlaneseq
        %v1092 = vshrl.u32 %v1091, 7
        %v1093 = vsub.s32 3, %v1092
        %v1094 = vrot.slane %v1043, %v1093
        %v1095 = vlaneseq
        %v1096 = vshrl.u32 %v1095, 7
        %v1097 = vsub.s32 0, %v1096
        %v1098 = vrot.slane %v1045, %v1097
        %v1099 = vlaneseq
        %v1100 = vshrl.u32 %v1099, 7
        %v1101 = vsub.s32 1, %v1100
        %v1102 = vrot.slane %v1045, %v1101
        %v1103 = vlaneseq
        %v1104 = vshrl.u32 %v1103, 7
        %v1105 = vsub.s32 2, %v1104
        %v1106 = vrot.slane %v1045, %v1105
        %v1107 = vlaneseq
        %v1108 = vshrl.u32 %v1107, 7
        %v1109 = vsub.s32 3, %v1108
        %v1110 = vrot.slane %v1045, %v1109
        %v1111 = vlaneseq
        %v1112 = vshrl.u32 %v1111, 7
        %v1113 = vsub.s32 0, %v1112
        %v1114 = vrot.slane %v1028, %v1113
        %v1115 = vlaneseq
        %v1116 = vshrl.u32 %v1115, 7
        %v1117 = vsub.s32 1, %v1116
        %v1118 = vrot.slane %v1028, %v1117
        %v1119 = vlaneseq
        %v1120 = vshrl.u32 %v1119, 7
        %v1121 = vsub.s32 2, %v1120
        %v1122 = vrot.slane %v1028, %v1121
        %v1123 = vlaneseq
        %v1124 = vshrl.u32 %v1123, 7
        %v1125 = vsub.s32 3, %v1124
        %v1126 = vrot.slane %v1028, %v1125
        %v1127 = vlaneseq
        %v1128 = vshrl.u32 %v1127, 7
        %v1129 = vsub.s32 0, %v1128
        %v1130 = vrot.slane %v1042, %v1129
        %v1131 = vlaneseq
        %v1132 = vshrl.u32 %v1131, 7
        %v1133 = vsub.s32 1, %v1132
        %v1134 = vrot.slane %v1042, %v1133
        %v1135 = vlaneseq
        %v1136 = vshrl.u32 %v1135, 7
        %v1137 = vsub.s32 2, %v1136
        %v1138 = vrot.slane %v1042, %v1137
        %v1139 = vlaneseq
        %v1140 = vshrl.u32 %v1139, 7
        %v1141 = vsub.s32 3, %v1140
        %v1142 = vrot.slane %v1042, %v1141
        %v1143 = vlaneseq
        %v1144 = vshrl.u32 %v1143, 7
        %v1145 = vsub.s32 0, %v1144
        %v1146 = vrot.slane %v1044, %v1145
        %v1147 = vlaneseq
        %v1148 = vshrl.u32 %v1147, 7
        %v1149 = vsub.s32 1, %v1148
        %v1150 = vrot.slane %v1044, %v1149
        %v1151 = vlaneseq
        %v1152 = vshrl.u32 %v1151, 7
        %v1153 = vsub.s32 2, %v1152
        %v1154 = vrot.slane %v1044, %v1153
        %v1155 = vlaneseq
        %v1156 = vshrl.u32 %v1155, 7
        %v1157 = vsub.s32 3, %v1156
        %v1158 = vrot.slane %v1044, %v1157
        %v1159 = vlaneseq
        %v1160 = vshrl.u32 %v1159, 7
        %v1161 = vsub.s32 0, %v1160
        %v1162 = vrot.slane %v1046, %v1161
        %v1163 = vlaneseq
        %v1164 = vshrl.u32 %v1163, 7
        %v1165 = vsub.s32 1, %v1164
        %v1166 = vrot.slane %v1046, %v1165
        %v1167 = vlaneseq
        %v1168 = vshrl.u32 %v1167, 7
        %v1169 = vsub.s32 2, %v1168
        %v1170 = vrot.slane %v1046, %v1169
        %v1171 = vlaneseq
        %v1172 = vshrl.u32 %v1171, 7
        %v1173 = vsub.s32 3, %v1172
        %v1174 = vrot.slane %v1046, %v1173
        %v1207 = vsub.f32 %v886, %v1050
        %v1208 = vsub.f32 %v887, %v1054
        %v1209 = vsub.f32 %v888, %v1058
        %v1210 = vsub.f32 %v889, %v1062
        %v1211 = vsub.f32 %v886, %v1066
        %v1212 = vsub.f32 %v887, %v1070
        %v1213 = vsub.f32 %v888, %v1074
        %v1214 = vsub.f32 %v889, %v1078
        %v1215 = vsub.f32 %v886, %v1082
        %v1216 = vsub.f32 %v887, %v1086
        %v1217 = vsub.f32 %v888, %v1090
        %v1218 = vsub.f32 %v889, %v1094
        %v1219 = vsub.f32 %v886, %v1098
        %v1220 = vsub.f32 %v887, %v1102
        %v1221 = vsub.f32 %v888, %v1106
        %v1222 = vsub.f32 %v889, %v1110
        %v1223 = vsub.f32 %v886, %v1114
        %v1224 = vsub.f32 %v887, %v1118
        %v1225 = vsub.f32 %v888, %v1122
        %v1226 = vsub.f32 %v889, %v1126
        %v1227 = vsub.f32 %v886, %v1130
        %v1228 = vsub.f32 %v887, %v1134
        %v1229 = vsub.f32 %v888, %v1138
        %v1230 = vsub.f32 %v889, %v1142
        %v1231 = vsub.f32 %v886, %v1146
        %v1232 = vsub.f32 %v887, %v1150
        %v1233 = vsub.f32 %v888, %v1154
        %v1234 = vsub.f32 %v889, %v1158
        %v1235 = vsub.f32 %v886, %v1162
        %v1236 = vsub.f32 %v887, %v1166
        %v1237 = vsub.f32 %v888, %v1170
        %v1238 = vsub.f32 %v889, %v1174
        %v1239 = vmax.f32 %v1207, 0.0
        %v1240 = vmax.f32 %v1208, 0.0
        %v1241 = vmax.f32 %v1209, 0.0
        %v1242 = vmax.f32 %v1210, 0.0
        %v1243 = vmax.f32 %v1211, 0.0
        %v1244 = vmax.f32 %v1212, 0.0
        %v1245 = vmax.f32 %v1213, 0.0
        %v1246 = vmax.f32 %v1214, 0.0
        %v1247 = vmax.f32 %v1215, 0.0
        %v1248 = vmax.f32 %v1216, 0.0
        %v1249 = vmax.f32 %v1217, 0.0
        %v1250 = vmax.f32 %v1218, 0.0
        %v1251 = vmax.f32 %v1219, 0.0
        %v1252 = vmax.f32 %v1220, 0.0
        %v1253 = vmax.f32 %v1221, 0.0
        %v1254 = vmax.f32 %v1222, 0.0
        %v1255 = vmax.f32 %v1223, 0.0
        %v1256 = vmax.f32 %v1224, 0.0
        %v1257 = vmax.f32 %v1225, 0.0
        %v1258 = vmax.f32 %v1226, 0.0
        %v1259 = vmax.f32 %v1227, 0.0
        %v1260 = vmax.f32 %v1228, 0.0
        %v1261 = vmax.f32 %v1229, 0.0
        %v1262 = vmax.f32 %v1230, 0.0
        %v1263 = vmax.f32 %v1231, 0.0
        %v1264 = vmax.f32 %v1232, 0.0
        %v1265 = vmax.f32 %v1233, 0.0
        %v1266 = vmax.f32 %v1234, 0.0
        %v1267 = vmax.f32 %v1235, 0.0
        %v1268 = vmax.f32 %v1236, 0.0
        %v1269 = vmax.f32 %v1237, 0.0
        %v1270 = vmax.f32 %v1238, 0.0
        %v1271 = vpack.c.bf16 %v1243, %v1239
        %v1272 = vpack.c.bf16 %v1244, %v1240
        %v1273 = vpack.c.bf16 %v1245, %v1241
        %v1274 = vpack.c.bf16 %v1246, %v1242
        %v1275 = vpack.c.bf16 %v1251, %v1247
        %v1276 = vpack.c.bf16 %v1252, %v1248
        %v1277 = vpack.c.bf16 %v1253, %v1249
        %v1278 = vpack.c.bf16 %v1254, %v1250
        %v1279 = vpack.c.bf16 %v1259, %v1255
        %v1280 = vpack.c.bf16 %v1260, %v1256
        %v1281 = vpack.c.bf16 %v1261, %v1257
        %v1282 = vpack.c.bf16 %v1262, %v1258
        %v1283 = vpack.c.bf16 %v1267, %v1263
        %v1284 = vpack.c.bf16 %v1268, %v1264
        %v1285 = vpack.c.bf16 %v1269, %v1265
        %v1286 = vpack.c.bf16 %v1270, %v1266
        %v1351 = vunpack.c.l.b16 %v902
        %v1352 = vunpack.c.l.b16 %v903
        %v1353 = vunpack.c.l.b16 %v904
        %v1354 = vunpack.c.l.b16 %v905
        %v1355 = vunpack.c.l.b16 %v906
        %v1356 = vunpack.c.l.b16 %v907
        %v1357 = vunpack.c.l.b16 %v908
        %v1358 = vunpack.c.l.b16 %v909
        %v1359 = vunpack.c.l.b16 %v910
        %v1360 = vunpack.c.l.b16 %v911
        %v1361 = vunpack.c.l.b16 %v912
        %v1362 = vunpack.c.l.b16 %v913
        %v1363 = vunpack.c.l.b16 %v914
        %v1364 = vunpack.c.l.b16 %v915
        %v1365 = vunpack.c.l.b16 %v916
        %v1366 = vunpack.c.l.b16 %v917
        %v1367 = vunpack.c.l.b16 %v918
        %v1368 = vunpack.c.l.b16 %v919
        %v1369 = vunpack.c.l.b16 %v920
        %v1370 = vunpack.c.l.b16 %v921
        %v1371 = vunpack.c.l.b16 %v922
        %v1372 = vunpack.c.l.b16 %v923
        %v1373 = vunpack.c.l.b16 %v924
        %v1374 = vunpack.c.l.b16 %v925
        %v1375 = vunpack.c.l.b16 %v926
        %v1376 = vunpack.c.l.b16 %v927
        %v1377 = vunpack.c.l.b16 %v928
        %v1378 = vunpack.c.l.b16 %v929
        %v1379 = vunpack.c.l.b16 %v930
        %v1380 = vunpack.c.l.b16 %v931
        %v1381 = vunpack.c.l.b16 %v932
        %v1382 = vunpack.c.l.b16 %v933
        %v1383 = vunpack.c.l.b16 %v934
        %v1384 = vunpack.c.l.b16 %v935
        %v1385 = vunpack.c.l.b16 %v936
        %v1386 = vunpack.c.l.b16 %v937
        %v1387 = vunpack.c.l.b16 %v938
        %v1388 = vunpack.c.l.b16 %v939
        %v1389 = vunpack.c.l.b16 %v940
        %v1390 = vunpack.c.l.b16 %v941
        %v1391 = vunpack.c.l.b16 %v942
        %v1392 = vunpack.c.l.b16 %v943
        %v1393 = vunpack.c.l.b16 %v944
        %v1394 = vunpack.c.l.b16 %v945
        %v1395 = vunpack.c.l.b16 %v946
        %v1396 = vunpack.c.l.b16 %v947
        %v1397 = vunpack.c.l.b16 %v948
        %v1398 = vunpack.c.l.b16 %v949
        %v1399 = vunpack.c.l.b16 %v950
        %v1400 = vunpack.c.l.b16 %v951
        %v1401 = vunpack.c.l.b16 %v952
        %v1402 = vunpack.c.l.b16 %v953
        %v1403 = vunpack.c.l.b16 %v954
        %v1404 = vunpack.c.l.b16 %v955
        %v1405 = vunpack.c.l.b16 %v956
        %v1406 = vunpack.c.l.b16 %v957
        %v1407 = vunpack.c.l.b16 %v958
        %v1408 = vunpack.c.l.b16 %v959
        %v1409 = vunpack.c.l.b16 %v960
        %v1410 = vunpack.c.l.b16 %v961
        %v1411 = vunpack.c.l.b16 %v962
        %v1412 = vunpack.c.l.b16 %v963
        %v1413 = vunpack.c.l.b16 %v964
        %v1414 = vunpack.c.l.b16 %v965
        %v1415 = vpack.c.b16 %v1352, %v1351
        %v1416 = vpack.c.b16 %v1354, %v1353
        %v1417 = vpack.c.b16 %v1356, %v1355
        %v1418 = vpack.c.b16 %v1358, %v1357
        %v1419 = vpack.c.b16 %v1360, %v1359
        %v1420 = vpack.c.b16 %v1362, %v1361
        %v1421 = vpack.c.b16 %v1364, %v1363
        %v1422 = vpack.c.b16 %v1366, %v1365
        %v1423 = vpack.c.b16 %v1368, %v1367
        %v1424 = vpack.c.b16 %v1370, %v1369
        %v1425 = vpack.c.b16 %v1372, %v1371
        %v1426 = vpack.c.b16 %v1374, %v1373
        %v1427 = vpack.c.b16 %v1376, %v1375
        %v1428 = vpack.c.b16 %v1378, %v1377
        %v1429 = vpack.c.b16 %v1380, %v1379
        %v1430 = vpack.c.b16 %v1382, %v1381
        %v1431 = vpack.c.b16 %v1384, %v1383
        %v1432 = vpack.c.b16 %v1386, %v1385
        %v1433 = vpack.c.b16 %v1388, %v1387
        %v1434 = vpack.c.b16 %v1390, %v1389
        %v1435 = vpack.c.b16 %v1392, %v1391
        %v1436 = vpack.c.b16 %v1394, %v1393
        %v1437 = vpack.c.b16 %v1396, %v1395
        %v1438 = vpack.c.b16 %v1398, %v1397
        %v1439 = vpack.c.b16 %v1400, %v1399
        %v1440 = vpack.c.b16 %v1402, %v1401
        %v1441 = vpack.c.b16 %v1404, %v1403
        %v1442 = vpack.c.b16 %v1406, %v1405
        %v1443 = vpack.c.b16 %v1408, %v1407
        %v1444 = vpack.c.b16 %v1410, %v1409
        %v1445 = vpack.c.b16 %v1412, %v1411
        %v1446 = vpack.c.b16 %v1414, %v1413
        %1479 = vmatprep.subr.bf16.mxu0 0
        %1480 = vmatpush1.bf16.msra.mxu0 %v1415
        %1481 = vmatprep.subr.bf16.mxu0 0
        %1482 = vmatpush1.bf16.msra.mxu0 %v1416
        %1483 = vmatprep.subr.bf16.mxu0 0
        %1484 = vmatpush1.bf16.msra.mxu0 %v1417
        %1485 = vmatprep.subr.bf16.mxu0 0
        %1486 = vmatpush1.bf16.msra.mxu0 %v1418
        %1487 = vmatprep.subr.bf16.mxu0 0
        %1488 = vmatpush1.bf16.msra.mxu0 %v1419
        %1489 = vmatprep.subr.bf16.mxu0 0
        %1490 = vmatpush1.bf16.msra.mxu0 %v1420
        %1491 = vmatprep.subr.bf16.mxu0 0
        %1492 = vmatpush1.bf16.msra.mxu0 %v1421
        %1493 = vmatprep.subr.bf16.mxu0 0
        %1494 = vmatpush1.bf16.msra.mxu0 %v1422
        %1495 = vmatprep.subr.bf16.mxu0 0
        %1496 = vmatpush1.bf16.msra.mxu0 %v1423
        %1497 = vmatprep.subr.bf16.mxu0 0
        %1498 = vmatpush1.bf16.msra.mxu0 %v1424
        %1499 = vmatprep.subr.bf16.mxu0 0
        %1500 = vmatpush1.bf16.msra.mxu0 %v1425
        %1501 = vmatprep.subr.bf16.mxu0 0
        %1502 = vmatpush1.bf16.msra.mxu0 %v1426
        %1503 = vmatprep.subr.bf16.mxu0 0
        %1504 = vmatpush1.bf16.msra.mxu0 %v1427
        %1505 = vmatprep.subr.bf16.mxu0 0
        %1506 = vmatpush1.bf16.msra.mxu0 %v1428
        %1507 = vmatprep.subr.bf16.mxu0 0
        %1508 = vmatpush1.bf16.msra.mxu0 %v1429
        %1509 = vmatprep.subr.bf16.mxu0 0
        %1510 = vmatpush1.bf16.msra.mxu0 %v1430
        %1511 = vmatprep.mubr.bf16.mxu0 %v1272
        %1512 = vmatmul.mubr.bf16.gmra.mrb[0].mxu0 %v1271
        %v1513 = vpop.f32.mrb[0].mxu0
        %v1514 = vadd.f32 0.0, %v1513
        %v1515 = vpop.f32.mrb[0].mxu0
        %v1516 = vpop.f32.mrb[0].mxu0
        %v1517 = vadd.f32 0.0, %v1516
        %v1518 = vpop.f32.mrb[0].mxu0
        %1519 = vmatprep.mubr.bf16.mxu0 %v1276
        %1520 = vmatmul.mubr.bf16.gmra.mrb[0].mxu0 %v1275
        %v1521 = vpop.f32.mrb[0].mxu0
        %v1522 = vadd.f32 0.0, %v1521
        %v1523 = vpop.f32.mrb[0].mxu0
        %v1524 = vpop.f32.mrb[0].mxu0
        %v1525 = vadd.f32 0.0, %v1524
        %v1526 = vpop.f32.mrb[0].mxu0
        %1527 = vmatprep.mubr.bf16.mxu0 %v1280
        %1528 = vmatmul.mubr.bf16.gmra.mrb[0].mxu0 %v1279
        %v1529 = vpop.f32.mrb[0].mxu0
        %v1530 = vadd.f32 0.0, %v1529
        %v1531 = vpop.f32.mrb[0].mxu0
        %v1532 = vpop.f32.mrb[0].mxu0
        %v1533 = vadd.f32 0.0, %v1532
        %v1534 = vpop.f32.mrb[0].mxu0
        %1535 = vmatprep.mubr.bf16.mxu0 %v1284
        %1536 = vmatmul.mubr.bf16.gmra.mrb[0].mxu0 %v1283
        %v1537 = vpop.f32.mrb[0].mxu0
        %v1538 = vadd.f32 0.0, %v1537
        %v1539 = vpop.f32.mrb[0].mxu0
        %v1540 = vpop.f32.mrb[0].mxu0
        %v1541 = vadd.f32 0.0, %v1540
        %v1542 = vpop.f32.mrb[0].mxu0
        %1543 = vdwg.mxu0
        %1544 = vmatprep.subr.bf16.mxu0 0
        %1545 = vmatpush1.bf16.msra.mxu0 %v1431
        %1546 = vmatprep.subr.bf16.mxu0 0
        %1547 = vmatpush1.bf16.msra.mxu0 %v1432
        %1548 = vmatprep.subr.bf16.mxu0 0
        %1549 = vmatpush1.bf16.msra.mxu0 %v1433
        %1550 = vmatprep.subr.bf16.mxu0 0
        %1551 = vmatpush1.bf16.msra.mxu0 %v1434
        %1552 = vmatprep.subr.bf16.mxu0 0
        %1553 = vmatpush1.bf16.msra.mxu0 %v1435
        %1554 = vmatprep.subr.bf16.mxu0 0
        %1555 = vmatpush1.bf16.msra.mxu0 %v1436
        %1556 = vmatprep.subr.bf16.mxu0 0
        %1557 = vmatpush1.bf16.msra.mxu0 %v1437
        %1558 = vmatprep.subr.bf16.mxu0 0
        %1559 = vmatpush1.bf16.msra.mxu0 %v1438
        %1560 = vmatprep.subr.bf16.mxu0 0
        %1561 = vmatpush1.bf16.msra.mxu0 %v1439
        %1562 = vmatprep.subr.bf16.mxu0 0
        %1563 = vmatpush1.bf16.msra.mxu0 %v1440
        %1564 = vmatprep.subr.bf16.mxu0 0
        %1565 = vmatpush1.bf16.msra.mxu0 %v1441
        %1566 = vmatprep.subr.bf16.mxu0 0
        %1567 = vmatpush1.bf16.msra.mxu0 %v1442
        %1568 = vmatprep.subr.bf16.mxu0 0
        %1569 = vmatpush1.bf16.msra.mxu0 %v1443
        %1570 = vmatprep.subr.bf16.mxu0 0
        %1571 = vmatpush1.bf16.msra.mxu0 %v1444
        %1572 = vmatprep.subr.bf16.mxu0 0
        %1573 = vmatpush1.bf16.msra.mxu0 %v1445
        %1574 = vmatprep.subr.bf16.mxu0 0
        %1575 = vmatpush1.bf16.msra.mxu0 %v1446
        %1576 = vmatprep.mubr.bf16.mxu0 %v1274
        %1577 = vmatmul.mubr.bf16.gmra.mrb[0].mxu0 %v1273
        %v1578 = vpop.f32.mrb[0].mxu0
        %v1579 = vadd.f32 %v1514, %v1578
        %v1580 = vpop.f32.mrb[0].mxu0
        %v1581 = vpop.f32.mrb[0].mxu0
        %v1582 = vadd.f32 %v1517, %v1581
        %v1583 = vpop.f32.mrb[0].mxu0
        %1584 = vmatprep.mubr.bf16.mxu0 %v1278
        %1585 = vmatmul.mubr.bf16.gmra.mrb[0].mxu0 %v1277
        %v1586 = vpop.f32.mrb[0].mxu0
        %v1587 = vadd.f32 %v1522, %v1586
        %v1588 = vpop.f32.mrb[0].mxu0
        %v1589 = vpop.f32.mrb[0].mxu0
        %v1590 = vadd.f32 %v1525, %v1589
        %v1591 = vpop.f32.mrb[0].mxu0
        %1592 = vmatprep.mubr.bf16.mxu0 %v1282
        %1593 = vmatmul.mubr.bf16.gmra.mrb[0].mxu0 %v1281
        %v1594 = vpop.f32.mrb[0].mxu0
        %v1595 = vadd.f32 %v1530, %v1594
        %v1596 = vpop.f32.mrb[0].mxu0
        %v1597 = vpop.f32.mrb[0].mxu0
        %v1598 = vadd.f32 %v1533, %v1597
        %v1599 = vpop.f32.mrb[0].mxu0
        %1600 = vmatprep.mubr.bf16.mxu0 %v1286
        %1601 = vmatmul.mubr.bf16.gmra.mrb[0].mxu0 %v1285
        %v1602 = vpop.f32.mrb[0].mxu0
        %v1603 = vadd.f32 %v1538, %v1602
        %v1604 = vpop.f32.mrb[0].mxu0
        %v1605 = vpop.f32.mrb[0].mxu0
        %v1606 = vadd.f32 %v1541, %v1605
        %v1607 = vpop.f32.mrb[0].mxu0
        %1608 = vdwg.mxu0
        %v1609 = vld [vmem:[#allocation4] sm:$0x1]
        %v1610 = vadd.f32 %v1579, %v1582
        %v1611 = vadd.f32 %v1610, %v1587
        %v1612 = vadd.f32 %v1611, %v1590
        %v1613 = vadd.f32 %v1612, %v1595
        %v1614 = vadd.f32 %v1613, %v1598
        %v1615 = vadd.f32 %v1614, %v1603
        %v1616 = vadd.f32 %v1615, %v1606
        %v1617 = vrot.slane %v1616, 4
        %v1618 = vadd.f32 %v1616, %v1617
        %v1619 = vrot.slane %v1618, 2
        %v1620 = vadd.f32 %v1618, %v1619
        %v1621 = vrot.slane %v1620, 1
        %v1622 = vadd.f32 %v1620, %v1621
        %v1623 = vadd.f32 %v1609, %v1622
        %1624 = vst [vmem:[#allocation4] sm:$0x1] %v1623
        %v1625 = vld [vmem:[#allocation5] sm:$0x1]
        %v1626 = vmul.f32 %v1579, %v1579
        %v1627 = vmul.f32 %v1582, %v1582
        %v1628 = vmul.f32 %v1587, %v1587
        %v1629 = vmul.f32 %v1590, %v1590
        %v1630 = vmul.f32 %v1595, %v1595
        %v1631 = vmul.f32 %v1598, %v1598
        %v1632 = vmul.f32 %v1603, %v1603
        %v1633 = vmul.f32 %v1606, %v1606
        %v1634 = vadd.f32 %v1626, %v1627
        %v1635 = vadd.f32 %v1634, %v1628
        %v1636 = vadd.f32 %v1635, %v1629
        %v1637 = vadd.f32 %v1636, %v1630
        %v1638 = vadd.f32 %v1637, %v1631
        %v1639 = vadd.f32 %v1638, %v1632
        %v1640 = vadd.f32 %v1639, %v1633
        %v1641 = vrot.slane %v1640, 4
        %v1642 = vadd.f32 %v1640, %v1641
        %v1643 = vrot.slane %v1642, 2
        %v1644 = vadd.f32 %v1642, %v1643
        %v1645 = vrot.slane %v1644, 1
        %v1646 = vadd.f32 %v1644, %v1645
        %v1647 = vadd.f32 %v1625, %v1646
        %1648 = vst [vmem:[#allocation5] sm:$0x1] %v1647
        %1649 = vst [vmem:[#allocation2] sm:$0xff] %v1579
        %1650 = vst [vmem:[#allocation2 + $0x8] sm:$0xff] %v1582
        %1651 = vst [vmem:[#allocation2 + $0x10] sm:$0xff] %v1587
        %1652 = vst [vmem:[#allocation2 + $0x18] sm:$0xff] %v1590
        %1653 = vst [vmem:[#allocation2 + $0x20] sm:$0xff] %v1595
        %1654 = vst [vmem:[#allocation2 + $0x28] sm:$0xff] %v1598
        %1655 = vst [vmem:[#allocation2 + $0x30] sm:$0xff] %v1603
        %1656 = vst [vmem:[#allocation2 + $0x38] sm:$0xff] %v1606
        %v1657 = vld [vmem:[#allocation4] sm:$0x1]
        %v1658 = vstv %s390
        %v1659 = vmul.f32 %v1657, %v1658
        %v1660 = vld [vmem:[#allocation5] sm:$0x1]
        %v1661 = vmul.f32 %v1660, %v1658
        %v1662 = vmul.f32 %v1659, %v1659
        %v1663 = vsub.f32 %v1661, %v1662
        %v1664 = vadd.f32 %v1663, 1e-05
        %v1665 = vrsqrt.pop %v1664
        %v1666 = vld [vmem:[%s8] sm:$0x1]
        %v1667 = vmul.f32 %v1665, %v1666
        %v1668 = vld [vmem:[%s9] sm:$0x1]
        %v1669 = vmul.f32 %v1659, %v1667
        %v1670 = vsub.f32 %v1668, %v1669
        %v1671 = vld [vmem:[#allocation2] sm:$0xff]
        %v1672 = vld [vmem:[#allocation2 + $0x8] sm:$0xff]
        %v1673 = vld [vmem:[#allocation2 + $0x10] sm:$0xff]
        %v1674 = vld [vmem:[#allocation2 + $0x18] sm:$0xff]
        %v1675 = vld [vmem:[#allocation2 + $0x20] sm:$0xff]
        %v1676 = vld [vmem:[#allocation2 + $0x28] sm:$0xff]
        %v1677 = vld [vmem:[#allocation2 + $0x30] sm:$0xff]
        %v1678 = vld [vmem:[#allocation2 + $0x38] sm:$0xff]
        %v1680 = vlaneseq
        %v1681 = vshrl.u32 %v1680, 7
        %v1682 = vsub.s32 0, %v1681
        %v1683 = vrot.slane %v1667, %v1682
        %v1685 = vmul.f32 %v1671, %v1683
        %v1686 = vmul.f32 %v1672, %v1683
        %v1687 = vmul.f32 %v1673, %v1683
        %v1688 = vmul.f32 %v1674, %v1683
        %v1689 = vmul.f32 %v1675, %v1683
        %v1690 = vmul.f32 %v1676, %v1683
        %v1691 = vmul.f32 %v1677, %v1683
        %v1692 = vmul.f32 %v1678, %v1683
        %v1694 = vlaneseq
        %v1695 = vshrl.u32 %v1694, 7
        %v1696 = vsub.s32 0, %v1695
        %v1697 = vrot.slane %v1670, %v1696
        %v1699 = vadd.f32 %v1685, %v1697
        %v1700 = vadd.f32 %v1686, %v1697
        %v1701 = vadd.f32 %v1687, %v1697
        %v1702 = vadd.f32 %v1688, %v1697
        %v1703 = vadd.f32 %v1689, %v1697
        %v1704 = vadd.f32 %v1690, %v1697
        %v1705 = vadd.f32 %v1691, %v1697
        %v1706 = vadd.f32 %v1692, %v1697
        %v1707 = vmax.f32 %v1699, 0.0
        %v1708 = vmax.f32 %v1700, 0.0
        %v1709 = vmax.f32 %v1701, 0.0
        %v1710 = vmax.f32 %v1702, 0.0
        %v1711 = vmax.f32 %v1703, 0.0
        %v1712 = vmax.f32 %v1704, 0.0
        %v1713 = vmax.f32 %v1705, 0.0
        %v1714 = vmax.f32 %v1706, 0.0
        %v1715 = vmul.f32 %v1707, %v659
        %v1716 = vmul.f32 %v1708, %v659
        %v1717 = vmul.f32 %v1709, %v659
        %v1718 = vmul.f32 %v1710, %v659
        %v1719 = vmul.f32 %v1711, %v659
        %v1720 = vmul.f32 %v1712, %v659
        %v1721 = vmul.f32 %v1713, %v659
        %v1722 = vmul.f32 %v1714, %v659
        %v1723 = vrot.slane %v1715, 4
        %v1724 = vmax.f32 %v1715, %v1723
        %v1725 = vrot.slane %v1724, 2
        %v1726 = vmax.f32 %v1724, %v1725
        %v1727 = vrot.slane %v1726, 1
        %v1728 = vmax.f32 %v1726, %v1727
        %v1729 = vrot.slane %v1716, 4
        %v1730 = vmax.f32 %v1716, %v1729
        %v1731 = vrot.slane %v1730, 2
        %v1732 = vmax.f32 %v1730, %v1731
        %v1733 = vrot.slane %v1732, 1
        %v1734 = vmax.f32 %v1732, %v1733
        %v1735 = vrot.slane %v1717, 4
        %v1736 = vmax.f32 %v1717, %v1735
        %v1737 = vrot.slane %v1736, 2
        %v1738 = vmax.f32 %v1736, %v1737
        %v1739 = vrot.slane %v1738, 1
        %v1740 = vmax.f32 %v1738, %v1739
        %v1741 = vrot.slane %v1718, 4
        %v1742 = vmax.f32 %v1718, %v1741
        %v1743 = vrot.slane %v1742, 2
        %v1744 = vmax.f32 %v1742, %v1743
        %v1745 = vrot.slane %v1744, 1
        %v1746 = vmax.f32 %v1744, %v1745
        %v1747 = vrot.slane %v1719, 4
        %v1748 = vmax.f32 %v1719, %v1747
        %v1749 = vrot.slane %v1748, 2
        %v1750 = vmax.f32 %v1748, %v1749
        %v1751 = vrot.slane %v1750, 1
        %v1752 = vmax.f32 %v1750, %v1751
        %v1753 = vrot.slane %v1720, 4
        %v1754 = vmax.f32 %v1720, %v1753
        %v1755 = vrot.slane %v1754, 2
        %v1756 = vmax.f32 %v1754, %v1755
        %v1757 = vrot.slane %v1756, 1
        %v1758 = vmax.f32 %v1756, %v1757
        %v1759 = vrot.slane %v1721, 4
        %v1760 = vmax.f32 %v1721, %v1759
        %v1761 = vrot.slane %v1760, 2
        %v1762 = vmax.f32 %v1760, %v1761
        %v1763 = vrot.slane %v1762, 1
        %v1764 = vmax.f32 %v1762, %v1763
        %v1765 = vrot.slane %v1722, 4
        %v1766 = vmax.f32 %v1722, %v1765
        %v1767 = vrot.slane %v1766, 2
        %v1768 = vmax.f32 %v1766, %v1767
        %v1769 = vrot.slane %v1768, 1
        %v1770 = vmax.f32 %v1768, %v1769
        %vm1779 = vcmask 1041409
        %v1780 = vsel %vm1779, %v1734, %v1728
        %vm1781 = vcmask 1042434
        %v1782 = vsel %vm1781, %v1740, %v1780
        %vm1783 = vcmask 1043459
        %v1784 = vsel %vm1783, %v1746, %v1782
        %vm1785 = vcmask 1044484
        %v1786 = vsel %vm1785, %v1752, %v1784
        %vm1787 = vcmask 1045509
        %v1788 = vsel %vm1787, %v1758, %v1786
        %vm1789 = vcmask 1046534
        %v1790 = vsel %vm1789, %v1764, %v1788
        %vm1791 = vcmask 1047559
        %v1792 = vsel %vm1791, %v1770, %v1790
        %1794 = vst [vmem:[%s373] sm:$0xff] %v1792
        %s1795 = sand.u32 %s239, 1
        %s1796 = scalar_lea.sflag [#allocation10], %s1795
        %s1797 = sand.u32 %s239, 1
        %s1798 = smul.addr %s1797, 8
        %s1799 = scalar_lea.vmem [#allocation13], %s1798
        // Predicated region
        $region65: #{tpu_custom_call.1} parent=55 // pred_check
          %p1800 = pneg %p249
        $region66: #{tpu_custom_call.1} parent=55 // pred_check_branch
          %1802 = sbr.rel (%p1800) target = $region68
        $region67: #{tpu_custom_call.1} parent=55 // pred_region
          %s1804 = ssub.s32 128, 128
          %1805 = vsyncadd %s1796, %s1804
          %s1806 = smul.addr %s32, 128
          %s1807 = scalar_lea.hbm %s10, %s1806
          %s1809 = sshll.u32 %s1799, 4
          %s1810 = int_to_ptr.vmem [resolvable:$true] %s1809
          %1812 = dma.vmem_to_hbm [thread:$0]  %s1810, 128, %s1807, %s1796
        $region68: #{tpu_custom_call.1} parent=55 // pred_fallthru
          _
      $region56: #{tpu_custom_call.1} parent=5 // pred_fallthru
        _
      %p1813 = scmp.le.s32.totalorder 2, %s27
      // Predicated region
      $region69: #{tpu_custom_call.1} parent=5 // pred_check
        %p1814 = pneg %p1813
      $region70: #{tpu_custom_call.1} parent=5 // pred_check_branch
        %1816 = sbr.rel (%p1814) target = $region72
      $region71: #{tpu_custom_call.1} parent=5 // pred_region
        %s1817 = ssub.s32 %s27, 2
        // Predicated region
        $region73: #{tpu_custom_call.1} parent=71 // pred_check
          %p1818 = pneg %p255
        $region74: #{tpu_custom_call.1} parent=71 // pred_check_branch
          %1820 = sbr.rel (%p1818) target = $region76
        $region75: #{tpu_custom_call.1} parent=71 // pred_region
          %s1821 = sand.u32 %s240, 1
          %s1822 = scalar_lea.sflag [#allocation10], %s1821
          %s1823 = sand.u32 %s240, 1
          %s1824 = smul.addr %s1823, 8
          %s1825 = scalar_lea.vmem [#allocation13], %s1824
          %1826 = dma.done %s1822, 128
        $region76: #{tpu_custom_call.1} parent=71 // pred_fallthru
          _
      $region72: #{tpu_custom_call.1} parent=5 // pred_fallthru
        _
    $region6: #{tpu_custom_call.1} parent=1 // loop_footer
      %s31 = sadd.s32 1, %s27
    $region7: #{tpu_custom_call.1} parent=1 // loop_footer_branch
      %26 = sbr.rel target = $region3
    $region8: #{tpu_custom_call.1} parent=1 // loop_exit
      _
    %1827 = vsyncpa [#allocation9], 1
    %s1828 = scalar_lea.sflag [#allocation9], 1
    %1829 = vsyncpa %s1828, 1
    %1830 = vsyncpa [#allocation12], 1
    %1831 = vsyncpa [#allocation10], 1
    %s1832 = scalar_lea.sflag [#allocation10], 1
    %1833 = vsyncpa %s1832, 1

</llo_original>
